<compile_context>
chip_gen: v7x
topology: tpu7x:2x2x1
jax: 0.10.0
libtpu: 0.0.40
codegen_flags: <defaults>
</compile_context>

<pallas_src>
import jax
import jax.numpy as jnp
from jax.experimental import pallas as pl
from jax.experimental.pallas import tpu as pltpu


def _cdiv(a, b):
    return (a + b - 1) // b


def _round_up(x, m):
    return _cdiv(x, m) * m


def _pick_tile_n(n_tokens, d, num_cores, target_tile_bytes=6 << 20):
    """Rows per grid step: ~6 MiB of model_output per tile, capped by one core's share."""
    rows = max(128, ((target_tile_bytes // (d * 4)) // 128) * 128)
    rows_cap = max(128, _round_up(_cdiv(n_tokens, num_cores), 128))
    return min(rows, rows_cap)


def _make_kernel(n_tokens, tile_n, tiles_per_core):
    def kernel(masks_ref, mo_ref, out_ref, acc_ref):
        core = pl.program_id(0)
        step = pl.program_id(1)

        @pl.when(step == 0)
        def _init():
            acc_ref[...] = jnp.zeros_like(acc_ref)

        # Global token-tile index and how many of its rows are inside [0, n_tokens).
        tile_idx = core * tiles_per_core + step
        valid = n_tokens - tile_idx * tile_n

        masks = masks_ref[...]                       # (2, tile_n) f32 {0,1}

        def accumulate(mo_tile):
            # One MXU matmul fuses both masked row-sums for this tile.
            acc_ref[...] += jnp.dot(
                masks,
                mo_tile,
                preferred_element_type=jnp.float32,
                precision=jax.lax.Precision.HIGHEST,   # exact f32; hidden under HBM DMA
            )

        @pl.when(valid >= tile_n)                    # common case: full tile, no masking
        def _full():
            accumulate(mo_ref[...])

        @pl.when(jnp.logical_and(valid > 0, valid < tile_n))   # partial last tile
        def _tail():
            # Zero out-of-range rows before the dot (0 * stale VMEM could be NaN).
            rows = jax.lax.broadcasted_iota(jnp.int32, (tile_n, mo_ref.shape[1]), 0)
            accumulate(jnp.where(rows < valid, mo_ref[...], 0.0))

        # valid <= 0: tile lies entirely past the end of model_output (only the padded
        # last step of the second core when the tile count is odd) -> contributes nothing.

        @pl.when(step == tiles_per_core - 1)
        def _finalize():
            out_ref[0, :, :] = acc_ref[...]

    return kernel


def subclass_loss(model_output, parent_mask, child_mask, subclass_relation,
                  *, tile_n=None, num_cores=2):
    """model_output: (N, D) f32; masks: (N,) bool; subclass_relation: (1, D) f32."""
    n, d = model_output.shape
    assert n >= 1

    parent_mask = jnp.ravel(parent_mask)
    child_mask = jnp.ravel(child_mask)

    if tile_n is None:
        tile_n = _pick_tile_n(n, d, num_cores)
    assert tile_n % 128 == 0, "tile_n must be a multiple of 128 (mask lane dim)"

    tiles_total = _cdiv(n, tile_n)
    tiles_per_core = _cdiv(tiles_total, num_cores)
    tiles_padded = tiles_per_core * num_cores

    # Masks packed into one (2, N) f32 operand (row 0 = parent, row 1 = child) and
    # zero-padded to the padded tile count.  This pad is tiny (8*N bytes);
    # model_output itself is streamed directly, never padded or copied.
    masks = jnp.stack([parent_mask, child_mask]).astype(jnp.float32)      # (2, N)
    n_pad = tiles_padded * tile_n
    if n_pad != n:
        masks = jnp.pad(masks, ((0, 0), (0, n_pad - n)))

    # VMEM accounting: double-buffered inputs + worst-case tail-branch temporaries
    # (iota, compare, masked copy) + small outputs/accumulator.  Raise the scoped VMEM
    # limit above the per-generation defaults (16 MiB v5e / 32 MiB v6e,v7x), capped at
    # 48 MiB so the working set still fits v7x's 64 MiB physical VMEM.
    tile_bytes = tile_n * d * 4
    mask_tile_bytes = 2 * tile_n * 4
    vmem_estimate = (
        2 * (tile_bytes + mask_tile_bytes)     # double-buffered mo + mask tiles
        + 3 * tile_bytes                       # tail path: iota + compare + masked copy
        + 2 * (2 * d * 4)                      # (1, 2, D) output block, double-buffered
        + 2 * d * 4                            # (2, D) accumulator scratch
    )
    vmem_limit_bytes = int(min(max(vmem_estimate + (8 << 20), 32 << 20), 48 << 20))

    kernel = _make_kernel(n, tile_n, tiles_per_core)

    partial_sums = pl.pallas_call(
        kernel,
        out_shape=jax.ShapeDtypeStruct((num_cores, 2, d), jnp.float32),
        grid_spec=pltpu.PrefetchScalarGridSpec(
            num_scalar_prefetch=0,
            grid=(num_cores, tiles_per_core),
            in_specs=[
                # Packed {0,1} masks: (2, tile_n) slab per step.
                pl.BlockSpec((2, tile_n),
                             lambda c, i: (0, c * tiles_per_core + i)),
                # model_output tile; clamp the block index so the (at most one) fully
                # padded tile never DMAs out of bounds (its contribution is skipped).
                pl.BlockSpec((tile_n, d),
                             lambda c, i: (jnp.minimum(c * tiles_per_core + i,
                                                       tiles_total - 1), 0)),
            ],
            # One (2, D) partial-sum slab per core; resident across the reduction axis.
            out_specs=pl.BlockSpec((1, 2, d), lambda c, i: (c, 0, 0)),
            scratch_shapes=[pltpu.VMEM((2, d), jnp.float32)],
        ),
        compiler_params=pltpu.CompilerParams(
            dimension_semantics=("parallel", "arbitrary"),  # cores x token reduction
            vmem_limit_bytes=vmem_limit_bytes,
        ),
    )(masks, model_output)

    # O(D) epilogue in plain XLA (negligible vs. the N*D stream).
    sums = jnp.sum(partial_sums, axis=0)                       # (2, D)
    # NOTE: an empty mask gives count == 0 -> inf/NaN, matching torch.mean over an
    # empty selection.
    parent = sums[0] / jnp.sum(parent_mask.astype(jnp.float32))
    child = sums[1] / jnp.sum(child_mask.astype(jnp.float32))
    diff = child + jnp.ravel(subclass_relation) - parent       # (D,)
    return jnp.mean(diff * diff)                               # nn.MSELoss (mean)


def subclass_loss_ref(model_output, parent_mask, child_mask, subclass_relation):
    parent = jnp.mean(model_output[parent_mask], axis=0, keepdims=True)
    child = jnp.mean(model_output[child_mask], axis=0, keepdims=True)
    return jnp.mean((child + subclass_relation - parent) ** 2)


if __name__ == "__main__":
    key = jax.random.PRNGKey(0)
    k_mo, k_rel = jax.random.split(key, 2)

    N_TOKENS = 300   # not a multiple of any tile size -> exercises the in-kernel tail path
    D_HIDDEN = 128   # lane-aligned hidden size

    model_output = jax.random.normal(k_mo, (N_TOKENS, D_HIDDEN), dtype=jnp.float32)

    # Deterministic stand-in for the pretrained SBERT '<' relation embedding
    # (the module computes it offline from a pretrained model; here it is synthetic).
    subclass_relation = jax.random.normal(k_rel, (1, D_HIDDEN), dtype=jnp.float32)

    # Deterministic boolean masks (parent / child token spans), each non-empty.
    parent_mask = jnp.zeros((N_TOKENS,), dtype=bool).at[1:40].set(True)
    child_mask = jnp.zeros((N_TOKENS,), dtype=bool).at[150:260].set(True)

    ref = subclass_loss_ref(model_output, parent_mask, child_mask, subclass_relation)

    # 1) Default (auto-sized) tiles.
    loss = jax.block_until_ready(
        subclass_loss(model_output, parent_mask, child_mask, subclass_relation))
    assert jnp.allclose(loss, ref, rtol=1e-5, atol=1e-5), (loss, ref)

    # 2) Tiny tiles: exercises multi-step accumulation, the partial last tile and the
    #    fully out-of-range padded tile on the second core.
    loss_small = jax.block_until_ready(
        subclass_loss(model_output, parent_mask, child_mask, subclass_relation,
                      tile_n=128))
    assert jnp.allclose(loss_small, ref, rtol=1e-5, atol=1e-5), (loss_small, ref)

    print("KERNEL_OK")
</pallas_src>

<mosaic_0001>
module attributes {stable_mosaic.version = 11 : i64} {
  func.func @kernel(%arg0: i32, %arg1: i32, %arg2: memref<2x256xf32, #tpu.memory_space<vmem>>, %arg3: memref<256x128xf32, #tpu.memory_space<vmem>>, %arg4: memref<1x2x128xf32, #tpu.memory_space<vmem>>, %arg5: memref<2x128xf32, #tpu.memory_space<vmem>>) attributes {dimension_semantics = [#tpu.dimension_semantics<parallel>, #tpu.dimension_semantics<arbitrary>], iteration_bounds = array<i64: 2, 1>, scalar_prefetch = 0 : i64, scratch_operands = 1 : i64, tpu.core_type = #tpu.core_type<tc>, window_params = [{transform_indices = @transform_0, window_bounds = array<i64: 2, 256>}, {transform_indices = @transform_1, window_bounds = array<i64: 256, 128>}, {transform_indices = @transform_2, window_bounds = array<i64: 1, 2, 128>}]} {
    %c0_i32 = arith.constant 0 : i32
    %0 = arith.cmpi eq, %arg1, %c0_i32 : i32
    %1 = arith.extui %0 : i1 to i32
    %c0_i32_0 = arith.constant 0 : i32
    %2 = arith.cmpi ne, %1, %c0_i32_0 : i32
    scf.if %2 {
      %cst = arith.constant 0.000000e+00 : f32
      %19 = vector.broadcast %cst : f32 to vector<2x128xf32>
      %c0_9 = arith.constant 0 : index
      %c0_10 = arith.constant 0 : index
      %20 = vector.load %arg5[%c0_9, %c0_10] : memref<2x128xf32, #tpu.memory_space<vmem>>, vector<2x128xf32>
      tpu.vector_store %arg5[%c0_9, %c0_10], %19 {strides = array<i32>} : memref<2x128xf32, #tpu.memory_space<vmem>>, vector<2x128xf32>,
    } else {
    }
    %c1_i32 = arith.constant 1 : i32
    %3 = arith.muli %arg0, %c1_i32 : i32
    %4 = arith.addi %3, %arg1 : i32
    %c256_i32 = arith.constant 256 : i32
    %5 = arith.muli %4, %c256_i32 : i32
    %c300_i32 = arith.constant 300 : i32
    %6 = arith.subi %c300_i32, %5 : i32
    %c0 = arith.constant 0 : index
    %c0_1 = arith.constant 0 : index
    %7 = vector.load %arg2[%c0, %c0_1] : memref<2x256xf32, #tpu.memory_space<vmem>>, vector<2x256xf32>
    %c256_i32_2 = arith.constant 256 : i32
    %8 = arith.cmpi sge, %6, %c256_i32_2 : i32
    %9 = arith.extui %8 : i1 to i32
    %c0_i32_3 = arith.constant 0 : i32
    %10 = arith.cmpi ne, %9, %c0_i32_3 : i32
    scf.if %10 {
      %c0_9 = arith.constant 0 : index
      %c0_10 = arith.constant 0 : index
      %19 = vector.load %arg3[%c0_9, %c0_10] : memref<256x128xf32, #tpu.memory_space<vmem>>, vector<256x128xf32>
      %c0_11 = arith.constant 0 : index
      %c0_12 = arith.constant 0 : index
      %20 = vector.load %arg5[%c0_11, %c0_12] : memref<2x128xf32, #tpu.memory_space<vmem>>, vector<2x128xf32>
      %cst = arith.constant dense<0.000000e+00> : vector<2x128xf32>
      %21 = tpu.matmul %7, %19, %cst {dimension_numbers = #tpu.dot_dimension_numbers<[1], [0], [0], [1], [0, 0, 1, 1], [], []>, precision = #tpu.contract_precision<fp32>} : vector<2x256xf32>, vector<256x128xf32>, vector<2x128xf32> -> vector<2x128xf32>
      %22 = arith.addf %20, %21 : vector<2x128xf32>
      %c0_13 = arith.constant 0 : index
      %c0_14 = arith.constant 0 : index
      %23 = vector.load %arg5[%c0_13, %c0_14] : memref<2x128xf32, #tpu.memory_space<vmem>>, vector<2x128xf32>
      tpu.vector_store %arg5[%c0_13, %c0_14], %22 {strides = array<i32>} : memref<2x128xf32, #tpu.memory_space<vmem>>, vector<2x128xf32>,
    } else {
    }
    %c0_i32_4 = arith.constant 0 : i32
    %11 = arith.cmpi sgt, %6, %c0_i32_4 : i32
    %c256_i32_5 = arith.constant 256 : i32
    %12 = arith.cmpi slt, %6, %c256_i32_5 : i32
    %13 = arith.andi %11, %12 : i1
    %14 = arith.extui %13 : i1 to i32
    %c0_i32_6 = arith.constant 0 : i32
    %15 = arith.cmpi ne, %14, %c0_i32_6 : i32
    scf.if %15 {
      %19 = tpu.iota {dimensions = array<i32: 0>} : vector<256x128xi32>
      %20 = vector.broadcast %6 : i32 to vector<256x128xi32>
      %21 = arith.cmpi slt, %19, %20 : vector<256x128xi32>
      %c0_9 = arith.constant 0 : index
      %c0_10 = arith.constant 0 : index
      %22 = vector.load %arg3[%c0_9, %c0_10] : memref<256x128xf32, #tpu.memory_space<vmem>>, vector<256x128xf32>
      %cst = arith.constant 0.000000e+00 : f32
      %23 = vector.broadcast %cst : f32 to vector<256x128xf32>
      %24 = arith.select %21, %22, %23 : vector<256x128xi1>, vector<256x128xf32>
      %c0_11 = arith.constant 0 : index
      %c0_12 = arith.constant 0 : index
      %25 = vector.load %arg5[%c0_11, %c0_12] : memref<2x128xf32, #tpu.memory_space<vmem>>, vector<2x128xf32>
      %cst_13 = arith.constant dense<0.000000e+00> : vector<2x128xf32>
      %26 = tpu.matmul %7, %24, %cst_13 {dimension_numbers = #tpu.dot_dimension_numbers<[1], [0], [0], [1], [0, 0, 1, 1], [], []>, precision = #tpu.contract_precision<fp32>} : vector<2x256xf32>, vector<256x128xf32>, vector<2x128xf32> -> vector<2x128xf32>
      %27 = arith.addf %25, %26 : vector<2x128xf32>
      %c0_14 = arith.constant 0 : index
      %c0_15 = arith.constant 0 : index
      %28 = vector.load %arg5[%c0_14, %c0_15] : memref<2x128xf32, #tpu.memory_space<vmem>>, vector<2x128xf32>
      tpu.vector_store %arg5[%c0_14, %c0_15], %27 {strides = array<i32>} : memref<2x128xf32, #tpu.memory_space<vmem>>, vector<2x128xf32>,
    } else {
    }
    %c0_i32_7 = arith.constant 0 : i32
    %16 = arith.cmpi eq, %arg1, %c0_i32_7 : i32
    %17 = arith.extui %16 : i1 to i32
    %c0_i32_8 = arith.constant 0 : i32
    %18 = arith.cmpi ne, %17, %c0_i32_8 : i32
    scf.if %18 {
      %c0_9 = arith.constant 0 : index
      %c0_10 = arith.constant 0 : index
      %19 = vector.load %arg5[%c0_9, %c0_10] : memref<2x128xf32, #tpu.memory_space<vmem>>, vector<2x128xf32>
      %c0_11 = arith.constant 0 : index
      %c0_12 = arith.constant 0 : index
      %c0_13 = arith.constant 0 : index
      %20 = vector.load %arg4[%c0_11, %c0_12, %c0_13] : memref<1x2x128xf32, #tpu.memory_space<vmem>>, vector<1x2x128xf32>
      %21 = vector.shape_cast %20 : vector<1x2x128xf32> to vector<2x128xf32>
      %22 = vector.shape_cast %19 : vector<2x128xf32> to vector<1x2x128xf32>
      tpu.vector_store %arg4[%c0_11, %c0_12, %c0_13], %22 {strides = array<i32>} : memref<1x2x128xf32, #tpu.memory_space<vmem>>, vector<1x2x128xf32>,
    } else {
    }
    return
  }
  func.func @transform_0(%arg0: i32, %arg1: i32) -> (i32, i32) {
    %c1_i32 = arith.constant 1 : i32
    %0 = arith.muli %arg0, %c1_i32 : i32
    %1 = arith.addi %0, %arg1 : i32
    %c0_i32 = arith.constant 0 : i32
    %c0_i32_0 = arith.constant 0 : i32
    return %c0_i32, %1 : i32, i32
  }
  func.func @transform_1(%arg0: i32, %arg1: i32) -> (i32, i32) {
    %c1_i32 = arith.constant 1 : i32
    %0 = arith.muli %arg0, %c1_i32 : i32
    %1 = arith.addi %0, %arg1 : i32
    %c1_i32_0 = arith.constant 1 : i32
    %2 = arith.minsi %1, %c1_i32_0 : i32
    %c0_i32 = arith.constant 0 : i32
    %c0_i32_1 = arith.constant 0 : i32
    return %2, %c0_i32 : i32, i32
  }
  func.func @transform_2(%arg0: i32, %arg1: i32) -> (i32, i32, i32) {
    %c0_i32 = arith.constant 0 : i32
    %c0_i32_0 = arith.constant 0 : i32
    %c0_i32_1 = arith.constant 0 : i32
    return %arg0, %c0_i32, %c0_i32_0 : i32, i32, i32
  }
}

</mosaic_0001>

<llo_original>
// kernel: tpu_custom_call.1
$region0: #{tpu_custom_call.1}
  #allocation0 [shape = 'u32[]', space=smem, size = 0x4, offset = 0x4, fixed_abs, tag = 'smem constant byte address 0x4 - core index']
  #allocation1 [shape = 'u32[144,128]{1,0:T(1,128)}', space=vmem, size = 0x12000, scoped, tag = 'internal scratch']
  #allocation2 [shape = 'f32[2,128]{1,0:T(2,128)}', space=vmem, size = 0x400, scoped, tag = 'scratch operand']
  %s0 = inlined_call_operand.hbm [shape: f32[2,512], index: 0, kind: input, shape index: {}]
  %s1 = inlined_call_operand.hbm [shape: f32[300,128], index: 1, kind: input, shape index: {}]
  %s2 = inlined_call_operand.hbm [shape: f32[2,2,128], index: 2, kind: output, shape index: {}]
  %s3 = sld [smem:[#allocation0]]
  $region65: #{tpu_custom_call.1} parent=0
    _
  %s5 = ssub.s32 1, %s3
  %s6 = scalar_select 0, %s5, %s3
  $region1: #{tpu_custom_call.1} parent=0
    #allocation3 [shape = 'u8[4096]{0}', space=vmem, size = 0x1000, scoped, tag = 'input window, operand 0']
    #allocation4 [shape = 's32[2]{0}', space=sflag, size = 0x8, scoped, tag = 'scoped memory for tpu_custom_call.1']
    #allocation5 [shape = 's32[2]{0}', space=sflag, size = 0x8, scoped, tag = 'scoped memory for tpu_custom_call.1']
    #allocation6 [shape = 'u8[262144]{0}', space=vmem, size = 0x40000, scoped, tag = 'input window, operand 1']
    #allocation7 [shape = 's32[2]{0}', space=sflag, size = 0x8, scoped, tag = 'scoped memory for tpu_custom_call.1']
    #allocation8 [shape = 'u8[2048]{0}', space=vmem, size = 0x800, scoped, tag = 'output window, operand 0']
    %7 = vsyncpa [#allocation4], 0
    %s8 = scalar_lea.sflag [#allocation4], 1
    %9 = vsyncpa %s8, 0
    %10 = vsyncpa [#allocation7], 0
    %s11 = scalar_lea.sflag [#allocation7], 1
    %12 = vsyncpa %s11, 0
    %13 = vsyncpa [#allocation5], 0
    %s14 = scalar_lea.sflag [#allocation5], 1
    %15 = vsyncpa %s14, 0
    loop: start=0, step=1, limit=4
    $region2: #{tpu_custom_call.1} parent=1 // loop_pre_header
      _
    $region3: #{tpu_custom_call.1} parent=1 // loop_header
      %s17 = sphi 0, %s21
      %p18 = scmp.ge.s32.totalorder %s17, 4
      %s24 = sphi 0, %s36
      %s25 = sphi 0, %s32
      %s26 = sphi 0, %s24
      %s27 = sphi 0, %s25
      %s28 = sphi 0, %s26
      %s29 = sphi 0, %s27
      %s41 = sphi 0, %s43
      %s44 = sphi 0, %s41
      %s45 = sphi 0, %s44
      %s61 = sphi 0, %s45
      %s73 = sphi 0, %s75
      %s76 = sphi 0, %s73
      %s77 = sphi 0, %s76
      %s93 = sphi 0, %s77
      %s99 = sphi 0, %s101
      %s102 = sphi 0, %s99
      %s103 = sphi 0, %s102
      %s119 = sphi 0, %s103
    $region4: #{tpu_custom_call.1} parent=1 // loop_header_branch
      %20 = sbr.rel (%p18) target = $region8
    $region5: #{tpu_custom_call.1} parent=1 // loop_body
      %s22 = ssub.s32 %s17, 1
      %s23 = ssub.s32 %s17, 2
      %s30 = sadd.s32 1, %s25
      %p31 = scmp.ge.s32.totalorder %s30, 1
      %s32 = scalar_select %p31, 0, %s30
      %s33 = sadd.s32 1, %s24
      %s34 = scalar_select %p31, %s33, %s24
      %p35 = scmp.ge.s32.totalorder %s34, 2
      %s36 = scalar_select %p35, 0, %s34
      %s37 = sadd.s32 %s24, %s25
      %s38 = sadd.s32 %s36, %s32
      %s39 = ssub.s32 %s37, %s38
      %p40 = scmp.eq.s32.totalorder %s39, 0
      %s42 = sadd.s32 %s41, 1
      %s43 = scalar_select %p40, %s41, %s42
      %p46 = pneg %p40
      %p47 = scmp.eq.s32.totalorder %s17, 1
      %p48 = por %p46, %p47
      %p49 = scmp.ne.s32.totalorder %s41, %s44
      %p50 = scmp.eq.s32.totalorder %s17, 0
      %p51 = por %p49, %p50
      %p52 = scmp.ne.s32.totalorder %s41, %s44
      %p53 = scmp.eq.s32.totalorder %s22, 1
      %p54 = por %p52, %p53
      %p55 = scmp.ne.s32.totalorder %s44, %s45
      %p56 = scmp.eq.s32.totalorder %s22, 0
      %p57 = por %p55, %p56
      %p58 = scmp.ne.s32.totalorder %s44, %s45
      %p59 = scmp.eq.s32.totalorder %s23, 1
      %p60 = por %p58, %p59
      %p62 = scmp.ne.s32.totalorder %s45, %s61
      %p63 = scmp.eq.s32.totalorder %s23, 0
      %p64 = por %p62, %p63
      %s65 = sadd.s32 %s24, %s25
      %p66 = scmp.lt.s32.totalorder %s65, 1
      %s67 = scalar_select %p66, %s65, 1
      %s68 = sadd.s32 %s36, %s32
      %p69 = scmp.lt.s32.totalorder %s68, 1
      %s70 = scalar_select %p69, %s68, 1
      %s71 = ssub.s32 %s67, %s70
      %p72 = scmp.eq.s32.totalorder %s71, 0
      %s74 = sadd.s32 %s73, 1
      %s75 = scalar_select %p72, %s73, %s74
      %p78 = pneg %p72
      %p79 = scmp.eq.s32.totalorder %s17, 1
      %p80 = por %p78, %p79
      %p81 = scmp.ne.s32.totalorder %s73, %s76
      %p82 = scmp.eq.s32.totalorder %s17, 0
      %p83 = por %p81, %p82
      %p84 = scmp.ne.s32.totalorder %s73, %s76
      %p85 = scmp.eq.s32.totalorder %s22, 1
      %p86 = por %p84, %p85
      %p87 = scmp.ne.s32.totalorder %s76, %s77
      %p88 = scmp.eq.s32.totalorder %s22, 0
      %p89 = por %p87, %p88
      %p90 = scmp.ne.s32.totalorder %s76, %s77
      %p91 = scmp.eq.s32.totalorder %s23, 1
      %p92 = por %p90, %p91
      %p94 = scmp.ne.s32.totalorder %s77, %s93
      %p95 = scmp.eq.s32.totalorder %s23, 0
      %p96 = por %p94, %p95
      %s97 = ssub.s32 %s24, %s36
      %p98 = scmp.eq.s32.totalorder %s97, 0
      %s100 = sadd.s32 %s99, 1
      %s101 = scalar_select %p98, %s99, %s100
      %p104 = pneg %p98
      %p105 = scmp.eq.s32.totalorder %s17, 1
      %p106 = por %p104, %p105
      %p107 = scmp.ne.s32.totalorder %s99, %s102
      %p108 = scmp.eq.s32.totalorder %s17, 0
      %p109 = por %p107, %p108
      %p110 = scmp.ne.s32.totalorder %s99, %s102
      %p111 = scmp.eq.s32.totalorder %s22, 1
      %p112 = por %p110, %p111
      %p113 = scmp.ne.s32.totalorder %s102, %s103
      %p114 = scmp.eq.s32.totalorder %s22, 0
      %p115 = por %p113, %p114
      %p116 = scmp.ne.s32.totalorder %s102, %s103
      %p117 = scmp.eq.s32.totalorder %s23, 1
      %p118 = por %p116, %p117
      %p120 = scmp.ne.s32.totalorder %s103, %s119
      %p121 = scmp.eq.s32.totalorder %s23, 0
      %p122 = por %p120, %p121
      %p123 = scmp.le.s32.totalorder 1, %s17
      %p124 = scmp.lt.s32.totalorder %s17, 3
      %p125 = pnand %p123, %p124
      %p126 = pneg %p125
      // Predicated region
      $region9: #{tpu_custom_call.1} parent=5 // pred_check
        _
      $region10: #{tpu_custom_call.1} parent=5 // pred_check_branch
        %128 = sbr.rel (%p125) target = $region12
      $region11: #{tpu_custom_call.1} parent=5 // pred_region
        %s129 = ssub.s32 %s17, 1
      $region12: #{tpu_custom_call.1} parent=5 // pred_fallthru
        _
      %p130 = scmp.lt.s32.totalorder %s17, 2
      // Predicated region
      $region13: #{tpu_custom_call.1} parent=5 // pred_check
        %p131 = pneg %p130
      $region14: #{tpu_custom_call.1} parent=5 // pred_check_branch
        %133 = sbr.rel (%p131) target = $region16
      $region15: #{tpu_custom_call.1} parent=5 // pred_region
        // Predicated region
        $region17: #{tpu_custom_call.1} parent=15 // pred_check
          %p134 = pneg %p51
        $region18: #{tpu_custom_call.1} parent=15 // pred_check_branch
          %136 = sbr.rel (%p134) target = $region20
        $region19: #{tpu_custom_call.1} parent=15 // pred_region
          %s137 = sand.u32 %s41, 1
          %s138 = scalar_lea.sflag [#allocation4], %s137
          %s139 = sand.u32 %s41, 1
          %s140 = smul.addr %s139, 4
          %s141 = scalar_lea.vmem [#allocation3], %s140
          %s142 = sadd.s32 %s24, %s25
          %s143 = smul.u32 2, %s142
          %s145 = ssub.s32 64, 64
          %146 = vsyncadd %s138, %s145
          %s147 = smul.addr %s143, 32
          %s148 = scalar_lea.hbm %s0, %s147
          %s150 = sshll.u32 %s141, 4
          %s151 = int_to_ptr.vmem [resolvable:$true] %s150
          %153 = dma.hbm_to_vmem [thread:$0]  %s148, 64, %s151, %s138
        $region20: #{tpu_custom_call.1} parent=15 // pred_fallthru
          _
        // Predicated region
        $region21: #{tpu_custom_call.1} parent=15 // pred_check
          %p154 = pneg %p83
        $region22: #{tpu_custom_call.1} parent=15 // pred_check_branch
          %156 = sbr.rel (%p154) target = $region24
        $region23: #{tpu_custom_call.1} parent=15 // pred_region
          %s157 = sand.u32 %s73, 1
          %s158 = scalar_lea.sflag [#allocation7], %s157
          %s159 = sand.u32 %s73, 1
          %s160 = smul.addr %s159, 256
          %s161 = scalar_lea.vmem [#allocation6], %s160
          %s162 = sadd.s32 %s24, %s25
          %p163 = scmp.lt.s32.totalorder %s162, 1
          %s164 = scalar_select %p163, %s162, 1
          %s165 = smul.u32 32, %s164
          %s166 = ssub.s32 38, %s165
          %p167 = scmp.lt.s32.totalorder %s166, 32
          %s168 = scalar_select %p167, %s166, 32
          %s169 = smul.u32 128, %s168
          %s171 = ssub.s32 4096, %s169
          %172 = vsyncadd %s158, %s171
          %p173 = scmp.ne.s32.totalorder 0, %s169
          %s174 = smul.addr %s165, 128
          %s175 = scalar_lea.hbm %s1, %s174
          %s176 = smul.u32 8, %s168
          %s177 = sshll.u32 %s161, 4
          %s178 = int_to_ptr.vmem [resolvable:$true] %s177
          %s179 = sshll.u32 %s176, 4
          %183 = dma.hbm_to_vmem [thread:$0]  (%p173), %s175, %s179, %s178, %s158, 128, 128, 8
        $region24: #{tpu_custom_call.1} parent=15 // pred_fallthru
          _
      $region16: #{tpu_custom_call.1} parent=5 // pred_fallthru
        _
      %p184 = scmp.le.s32.totalorder 1, %s17
      %p185 = scmp.lt.s32.totalorder %s17, 3
      %p186 = pnand %p184, %p185
      %p187 = pneg %p186
      // Predicated region
      $region25: #{tpu_custom_call.1} parent=5 // pred_check
        _
      $region26: #{tpu_custom_call.1} parent=5 // pred_check_branch
        %189 = sbr.rel (%p186) target = $region28
      $region27: #{tpu_custom_call.1} parent=5 // pred_region
        %s190 = ssub.s32 %s17, 1
        %s191 = sand.u32 %s44, 1
        %s192 = scalar_lea.sflag [#allocation4], %s191
        %s193 = sand.u32 %s44, 1
        %s194 = smul.addr %s193, 4
        %s195 = scalar_lea.vmem [#allocation3], %s194
        // Predicated region
        $region29: #{tpu_custom_call.1} parent=27 // pred_check
          %p196 = pneg %p57
        $region30: #{tpu_custom_call.1} parent=27 // pred_check_branch
          %198 = sbr.rel (%p196) target = $region32
        $region31: #{tpu_custom_call.1} parent=27 // pred_region
          %199 = dma.done %s192, 64
        $region32: #{tpu_custom_call.1} parent=27 // pred_fallthru
          _
        %s200 = sand.u32 %s76, 1
        %s201 = scalar_lea.sflag [#allocation7], %s200
        %s202 = sand.u32 %s76, 1
        %s203 = smul.addr %s202, 256
        %s204 = scalar_lea.vmem [#allocation6], %s203
        // Predicated region
        $region33: #{tpu_custom_call.1} parent=27 // pred_check
          %p205 = pneg %p89
        $region34: #{tpu_custom_call.1} parent=27 // pred_check_branch
          %207 = sbr.rel (%p205) target = $region36
        $region35: #{tpu_custom_call.1} parent=27 // pred_region
          %208 = dma.done %s201, 4096
        $region36: #{tpu_custom_call.1} parent=27 // pred_fallthru
          _
        %s209 = sand.u32 %s44, 1
        %s210 = scalar_lea.sflag [#allocation4], %s209
        %s211 = sand.u32 %s44, 1
        %s212 = smul.addr %s211, 4
        %s213 = scalar_lea.vmem [#allocation3], %s212
        %p214 = pneg %p57
        %p215 = pneg %p54
        %s216 = sand.u32 %s76, 1
        %s217 = scalar_lea.sflag [#allocation7], %s216
        %s218 = sand.u32 %s76, 1
        %s219 = smul.addr %s218, 256
        %s220 = scalar_lea.vmem [#allocation6], %s219
        %p221 = pneg %p89
        %p222 = pneg %p86
        %p223 = pneg %p115
        %p224 = pneg %p112
        %s225 = sand.u32 %s102, 1
        %s226 = scalar_lea.sflag [#allocation5], %s225
        %s227 = sand.u32 %s102, 1
        %s228 = smul.addr %s227, 2
        %s229 = scalar_lea.vmem [#allocation8], %s228
        %s230 = sadd.s32 %s26, %s27
        %s231 = smul.u32 2, %s230
        %s232 = sadd.s32 %s26, %s27
        %p233 = scmp.lt.s32.totalorder %s232, 1
        %s234 = scalar_select %p233, %s232, 1
        %s235 = smul.u32 32, %s234
        %s236 = ssub.s32 38, %s235
        %p237 = scmp.lt.s32.totalorder %s236, 32
        %s238 = scalar_select %p237, %s236, 32
        %s239 = smul.u32 128, %s238
        %p240 = scmp.eq.s32.totalorder %s27, 0
        // Predicated region
        $region37: #{tpu_custom_call.1} parent=27 // pred_check
          %p241 = pneg %p240
        $region38: #{tpu_custom_call.1} parent=27 // pred_check_branch
          %243 = sbr.rel (%p241) target = $region40
        $region39: #{tpu_custom_call.1} parent=27 // pred_region
          %244 = vst [vmem:[#allocation2] sm:$0x3] 0.0
        $region40: #{tpu_custom_call.1} parent=27 // pred_fallthru
          _
        %s245 = sadd.s32 %s26, %s27
        %s246 = smul.u32 %s245, 256
        %s247 = ssub.s32 300, %s246
        %v248 = vld [vmem:[%s195] sm:$0xf]
        %p249 = scmp.ge.s32.totalorder %s247, 256
        // Predicated region
        $region41: #{tpu_custom_call.1} parent=27 // pred_check
          %p250 = pneg %p249
        $region42: #{tpu_custom_call.1} parent=27 // pred_check_branch
          %252 = sbr.rel (%p250) target = $region44
        $region43: #{tpu_custom_call.1} parent=27 // pred_region
          %v253 = vld [vmem:[%s204] sm:$0xff]
          %v254 = vld [vmem:[%s204 + $0x8] sm:$0xff]
          %v255 = vld [vmem:[%s204 + $0x10] sm:$0xff]
          %v256 = vld [vmem:[%s204 + $0x18] sm:$0xff]
          %v257 = vld [vmem:[%s204 + $0x20] sm:$0xff]
          %v258 = vld [vmem:[%s204 + $0x28] sm:$0xff]
          %v259 = vld [vmem:[%s204 + $0x30] sm:$0xff]
          %v260 = vld [vmem:[%s204 + $0x38] sm:$0xff]
          %v261 = vld [vmem:[%s204 + $0x40] sm:$0xff]
          %v262 = vld [vmem:[%s204 + $0x48] sm:$0xff]
          %v263 = vld [vmem:[%s204 + $0x50] sm:$0xff]
          %v264 = vld [vmem:[%s204 + $0x58] sm:$0xff]
          %v265 = vld [vmem:[%s204 + $0x60] sm:$0xff]
          %v266 = vld [vmem:[%s204 + $0x68] sm:$0xff]
          %v267 = vld [vmem:[%s204 + $0x70] sm:$0xff]
          %v268 = vld [vmem:[%s204 + $0x78] sm:$0xff]
          %v269 = vld [vmem:[%s204 + $0x80] sm:$0xff]
          %v270 = vld [vmem:[%s204 + $0x88] sm:$0xff]
          %v271 = vld [vmem:[%s204 + $0x90] sm:$0xff]
          %v272 = vld [vmem:[%s204 + $0x98] sm:$0xff]
          %v273 = vld [vmem:[%s204 + $0xa0] sm:$0xff]
          %v274 = vld [vmem:[%s204 + $0xa8] sm:$0xff]
          %v275 = vld [vmem:[%s204 + $0xb0] sm:$0xff]
          %v276 = vld [vmem:[%s204 + $0xb8] sm:$0xff]
          %v277 = vld [vmem:[%s204 + $0xc0] sm:$0xff]
          %v278 = vld [vmem:[%s204 + $0xc8] sm:$0xff]
          %v279 = vld [vmem:[%s204 + $0xd0] sm:$0xff]
          %v280 = vld [vmem:[%s204 + $0xd8] sm:$0xff]
          %v281 = vld [vmem:[%s204 + $0xe0] sm:$0xff]
          %v282 = vld [vmem:[%s204 + $0xe8] sm:$0xff]
          %v283 = vld [vmem:[%s204 + $0xf0] sm:$0xff]
          %v284 = vld [vmem:[%s204 + $0xf8] sm:$0xff]
          %v285 = vld [vmem:[#allocation2] sm:$0x3]
          %v288 = vunpack.c.l.s4 1983009808
          %v289 = vunpack.c.0.s8 %v288
          %v290 = vlaneseq
          %v291 = vshrl.u32 %v290, 7
          %v292 = vsub.s32 %v289, %v291
          %v293 = vrot.slane %v248, %v292
          %v294 = vcombine.high %v293, %v293
          %297 = vmatprep.subr.mxu0 0.0
          %v298 = vand.u32 %v253, 4294901760
          %299 = vmatpush1.msra.mxu0 %v298
          %300 = vmatprep.subr.mxu0 0.0
          %v301 = vand.u32 %v254, 4294901760
          %302 = vmatpush1.msra.mxu0 %v301
          %303 = vmatprep.subr.mxu0 0.0
          %v304 = vand.u32 %v255, 4294901760
          %305 = vmatpush1.msra.mxu0 %v304
          %306 = vmatprep.subr.mxu0 0.0
          %v307 = vand.u32 %v256, 4294901760
          %308 = vmatpush1.msra.mxu0 %v307
          %309 = vmatprep.subr.mxu0 0.0
          %v310 = vand.u32 %v257, 4294901760
          %311 = vmatpush1.msra.mxu0 %v310
          %312 = vmatprep.subr.mxu0 0.0
          %v313 = vand.u32 %v258, 4294901760
          %314 = vmatpush1.msra.mxu0 %v313
          %315 = vmatprep.subr.mxu0 0.0
          %v316 = vand.u32 %v259, 4294901760
          %317 = vmatpush1.msra.mxu0 %v316
          %318 = vmatprep.subr.mxu0 0.0
          %v319 = vand.u32 %v260, 4294901760
          %320 = vmatpush1.msra.mxu0 %v319
          %321 = vmatprep.subr.mxu0 0.0
          %v322 = vand.u32 %v261, 4294901760
          %323 = vmatpush1.msra.mxu0 %v322
          %324 = vmatprep.subr.mxu0 0.0
          %v325 = vand.u32 %v262, 4294901760
          %326 = vmatpush1.msra.mxu0 %v325
          %327 = vmatprep.subr.mxu0 0.0
          %v328 = vand.u32 %v263, 4294901760
          %329 = vmatpush1.msra.mxu0 %v328
          %330 = vmatprep.subr.mxu0 0.0
          %v331 = vand.u32 %v264, 4294901760
          %332 = vmatpush1.msra.mxu0 %v331
          %333 = vmatprep.subr.mxu0 0.0
          %v334 = vand.u32 %v265, 4294901760
          %335 = vmatpush1.msra.mxu0 %v334
          %336 = vmatprep.subr.mxu0 0.0
          %v337 = vand.u32 %v266, 4294901760
          %338 = vmatpush1.msra.mxu0 %v337
          %339 = vmatprep.subr.mxu0 0.0
          %v340 = vand.u32 %v267, 4294901760
          %341 = vmatpush1.msra.mxu0 %v340
          %342 = vmatprep.subr.mxu0 0.0
          %v343 = vand.u32 %v268, 4294901760
          %344 = vmatpush1.msra.mxu0 %v343
          %345 = vmatprep.subr.mxu0 0.0
          %v346 = vand.u32 %v269, 4294901760
          %347 = vmatpush1.msra.mxu0 %v346
          %348 = vmatprep.subr.mxu0 0.0
          %v349 = vand.u32 %v270, 4294901760
          %350 = vmatpush1.msra.mxu0 %v349
          %351 = vmatprep.subr.mxu0 0.0
          %v352 = vand.u32 %v271, 4294901760
          %353 = vmatpush1.msra.mxu0 %v352
          %354 = vmatprep.subr.mxu0 0.0
          %v355 = vand.u32 %v272, 4294901760
          %356 = vmatpush1.msra.mxu0 %v355
          %357 = vmatprep.subr.mxu0 0.0
          %v358 = vand.u32 %v273, 4294901760
          %359 = vmatpush1.msra.mxu0 %v358
          %360 = vmatprep.subr.mxu0 0.0
          %v361 = vand.u32 %v274, 4294901760
          %362 = vmatpush1.msra.mxu0 %v361
          %363 = vmatprep.subr.mxu0 0.0
          %v364 = vand.u32 %v275, 4294901760
          %365 = vmatpush1.msra.mxu0 %v364
          %366 = vmatprep.subr.mxu0 0.0
          %v367 = vand.u32 %v276, 4294901760
          %368 = vmatpush1.msra.mxu0 %v367
          %369 = vmatprep.subr.mxu0 0.0
          %v370 = vand.u32 %v277, 4294901760
          %371 = vmatpush1.msra.mxu0 %v370
          %372 = vmatprep.subr.mxu0 0.0
          %v373 = vand.u32 %v278, 4294901760
          %374 = vmatpush1.msra.mxu0 %v373
          %375 = vmatprep.subr.mxu0 0.0
          %v376 = vand.u32 %v279, 4294901760
          %377 = vmatpush1.msra.mxu0 %v376
          %378 = vmatprep.subr.mxu0 0.0
          %v379 = vand.u32 %v280, 4294901760
          %380 = vmatpush1.msra.mxu0 %v379
          %381 = vmatprep.subr.mxu0 0.0
          %v382 = vand.u32 %v281, 4294901760
          %383 = vmatpush1.msra.mxu0 %v382
          %384 = vmatprep.subr.mxu0 0.0
          %v385 = vand.u32 %v282, 4294901760
          %386 = vmatpush1.msra.mxu0 %v385
          %387 = vmatprep.subr.mxu0 0.0
          %v388 = vand.u32 %v283, 4294901760
          %389 = vmatpush1.msra.mxu0 %v388
          %390 = vmatprep.subr.mxu0 0.0
          %v391 = vand.u32 %v284, 4294901760
          %392 = vmatpush1.msra.mxu0 %v391
          %v393 = vand.u32 %v294, 4294901760
          %v394 = vsub.f32 %v294, %v393
          %v395 = vand.u32 %v394, 4294901760
          %v396 = vsub.f32 %v394, %v395
          %v397 = vand.u32 %v396, 4294901760
          %398 = vmatprep.mubr.f32.mxu0 %v397
          %v399 = vand.u32 %v293, 4294901760
          %v400 = vsub.f32 %v293, %v399
          %v401 = vand.u32 %v400, 4294901760
          %v402 = vsub.f32 %v400, %v401
          %v403 = vand.u32 %v402, 4294901760
          %404 = vmatmul.mubr.f32.gmra.mrb[0].mxu0 %v403
          %v405 = vpop.f32.mrb[0].mxu0
          %v406 = vadd.f32 0.0, %v405
          %v407 = vpop.f32.mrb[0].mxu0
          %408 = vdwg.mxu0
          %409 = vmatprep.subr.mxu0 0.0
          %v410 = vand.u32 %v253, 4294901760
          %v411 = vsub.f32 %v253, %v410
          %v412 = vand.u32 %v411, 4294901760
          %v413 = vsub.f32 %v411, %v412
          %v414 = vand.u32 %v413, 4294901760
          %415 = vmatpush1.msra.mxu0 %v414
          %416 = vmatprep.subr.mxu0 0.0
          %v417 = vand.u32 %v254, 4294901760
          %v418 = vsub.f32 %v254, %v417
          %v419 = vand.u32 %v418, 4294901760
          %v420 = vsub.f32 %v418, %v419
          %v421 = vand.u32 %v420, 4294901760
          %422 = vmatpush1.msra.mxu0 %v421
          %423 = vmatprep.subr.mxu0 0.0
          %v424 = vand.u32 %v255, 4294901760
          %v425 = vsub.f32 %v255, %v424
          %v426 = vand.u32 %v425, 4294901760
          %v427 = vsub.f32 %v425, %v426
          %v428 = vand.u32 %v427, 4294901760
          %429 = vmatpush1.msra.mxu0 %v428
          %430 = vmatprep.subr.mxu0 0.0
          %v431 = vand.u32 %v256, 4294901760
          %v432 = vsub.f32 %v256, %v431
          %v433 = vand.u32 %v432, 4294901760
          %v434 = vsub.f32 %v432, %v433
          %v435 = vand.u32 %v434, 4294901760
          %436 = vmatpush1.msra.mxu0 %v435
          %437 = vmatprep.subr.mxu0 0.0
          %v438 = vand.u32 %v257, 4294901760
          %v439 = vsub.f32 %v257, %v438
          %v440 = vand.u32 %v439, 4294901760
          %v441 = vsub.f32 %v439, %v440
          %v442 = vand.u32 %v441, 4294901760
          %443 = vmatpush1.msra.mxu0 %v442
          %444 = vmatprep.subr.mxu0 0.0
          %v445 = vand.u32 %v258, 4294901760
          %v446 = vsub.f32 %v258, %v445
          %v447 = vand.u32 %v446, 4294901760
          %v448 = vsub.f32 %v446, %v447
          %v449 = vand.u32 %v448, 4294901760
          %450 = vmatpush1.msra.mxu0 %v449
          %451 = vmatprep.subr.mxu0 0.0
          %v452 = vand.u32 %v259, 4294901760
          %v453 = vsub.f32 %v259, %v452
          %v454 = vand.u32 %v453, 4294901760
          %v455 = vsub.f32 %v453, %v454
          %v456 = vand.u32 %v455, 4294901760
          %457 = vmatpush1.msra.mxu0 %v456
          %458 = vmatprep.subr.mxu0 0.0
          %v459 = vand.u32 %v260, 4294901760
          %v460 = vsub.f32 %v260, %v459
          %v461 = vand.u32 %v460, 4294901760
          %v462 = vsub.f32 %v460, %v461
          %v463 = vand.u32 %v462, 4294901760
          %464 = vmatpush1.msra.mxu0 %v463
          %465 = vmatprep.subr.mxu0 0.0
          %v466 = vand.u32 %v261, 4294901760
          %v467 = vsub.f32 %v261, %v466
          %v468 = vand.u32 %v467, 4294901760
          %v469 = vsub.f32 %v467, %v468
          %v470 = vand.u32 %v469, 4294901760
          %471 = vmatpush1.msra.mxu0 %v470
          %472 = vmatprep.subr.mxu0 0.0
          %v473 = vand.u32 %v262, 4294901760
          %v474 = vsub.f32 %v262, %v473
          %v475 = vand.u32 %v474, 4294901760
          %v476 = vsub.f32 %v474, %v475
          %v477 = vand.u32 %v476, 4294901760
          %478 = vmatpush1.msra.mxu0 %v477
          %479 = vmatprep.subr.mxu0 0.0
          %v480 = vand.u32 %v263, 4294901760
          %v481 = vsub.f32 %v263, %v480
          %v482 = vand.u32 %v481, 4294901760
          %v483 = vsub.f32 %v481, %v482
          %v484 = vand.u32 %v483, 4294901760
          %485 = vmatpush1.msra.mxu0 %v484
          %486 = vmatprep.subr.mxu0 0.0
          %v487 = vand.u32 %v264, 4294901760
          %v488 = vsub.f32 %v264, %v487
          %v489 = vand.u32 %v488, 4294901760
          %v490 = vsub.f32 %v488, %v489
          %v491 = vand.u32 %v490, 4294901760
          %492 = vmatpush1.msra.mxu0 %v491
          %493 = vmatprep.subr.mxu0 0.0
          %v494 = vand.u32 %v265, 4294901760
          %v495 = vsub.f32 %v265, %v494
          %v496 = vand.u32 %v495, 4294901760
          %v497 = vsub.f32 %v495, %v496
          %v498 = vand.u32 %v497, 4294901760
          %499 = vmatpush1.msra.mxu0 %v498
          %500 = vmatprep.subr.mxu0 0.0
          %v501 = vand.u32 %v266, 4294901760
          %v502 = vsub.f32 %v266, %v501
          %v503 = vand.u32 %v502, 4294901760
          %v504 = vsub.f32 %v502, %v503
          %v505 = vand.u32 %v504, 4294901760
          %506 = vmatpush1.msra.mxu0 %v505
          %507 = vmatprep.subr.mxu0 0.0
          %v508 = vand.u32 %v267, 4294901760
          %v509 = vsub.f32 %v267, %v508
          %v510 = vand.u32 %v509, 4294901760
          %v511 = vsub.f32 %v509, %v510
          %v512 = vand.u32 %v511, 4294901760
          %513 = vmatpush1.msra.mxu0 %v512
          %514 = vmatprep.subr.mxu0 0.0
          %v515 = vand.u32 %v268, 4294901760
          %v516 = vsub.f32 %v268, %v515
          %v517 = vand.u32 %v516, 4294901760
          %v518 = vsub.f32 %v516, %v517
          %v519 = vand.u32 %v518, 4294901760
          %520 = vmatpush1.msra.mxu0 %v519
          %521 = vmatprep.subr.mxu0 0.0
          %v522 = vand.u32 %v269, 4294901760
          %v523 = vsub.f32 %v269, %v522
          %v524 = vand.u32 %v523, 4294901760
          %v525 = vsub.f32 %v523, %v524
          %v526 = vand.u32 %v525, 4294901760
          %527 = vmatpush1.msra.mxu0 %v526
          %528 = vmatprep.subr.mxu0 0.0
          %v529 = vand.u32 %v270, 4294901760
          %v530 = vsub.f32 %v270, %v529
          %v531 = vand.u32 %v530, 4294901760
          %v532 = vsub.f32 %v530, %v531
          %v533 = vand.u32 %v532, 4294901760
          %534 = vmatpush1.msra.mxu0 %v533
          %535 = vmatprep.subr.mxu0 0.0
          %v536 = vand.u32 %v271, 4294901760
          %v537 = vsub.f32 %v271, %v536
          %v538 = vand.u32 %v537, 4294901760
          %v539 = vsub.f32 %v537, %v538
          %v540 = vand.u32 %v539, 4294901760
          %541 = vmatpush1.msra.mxu0 %v540
          %542 = vmatprep.subr.mxu0 0.0
          %v543 = vand.u32 %v272, 4294901760
          %v544 = vsub.f32 %v272, %v543
          %v545 = vand.u32 %v544, 4294901760
          %v546 = vsub.f32 %v544, %v545
          %v547 = vand.u32 %v546, 4294901760
          %548 = vmatpush1.msra.mxu0 %v547
          %549 = vmatprep.subr.mxu0 0.0
          %v550 = vand.u32 %v273, 4294901760
          %v551 = vsub.f32 %v273, %v550
          %v552 = vand.u32 %v551, 4294901760
          %v553 = vsub.f32 %v551, %v552
          %v554 = vand.u32 %v553, 4294901760
          %555 = vmatpush1.msra.mxu0 %v554
          %556 = vmatprep.subr.mxu0 0.0
          %v557 = vand.u32 %v274, 4294901760
          %v558 = vsub.f32 %v274, %v557
          %v559 = vand.u32 %v558, 4294901760
          %v560 = vsub.f32 %v558, %v559
          %v561 = vand.u32 %v560, 4294901760
          %562 = vmatpush1.msra.mxu0 %v561
          %563 = vmatprep.subr.mxu0 0.0
          %v564 = vand.u32 %v275, 4294901760
          %v565 = vsub.f32 %v275, %v564
          %v566 = vand.u32 %v565, 4294901760
          %v567 = vsub.f32 %v565, %v566
          %v568 = vand.u32 %v567, 4294901760
          %569 = vmatpush1.msra.mxu0 %v568
          %570 = vmatprep.subr.mxu0 0.0
          %v571 = vand.u32 %v276, 4294901760
          %v572 = vsub.f32 %v276, %v571
          %v573 = vand.u32 %v572, 4294901760
          %v574 = vsub.f32 %v572, %v573
          %v575 = vand.u32 %v574, 4294901760
          %576 = vmatpush1.msra.mxu0 %v575
          %577 = vmatprep.subr.mxu0 0.0
          %v578 = vand.u32 %v277, 4294901760
          %v579 = vsub.f32 %v277, %v578
          %v580 = vand.u32 %v579, 4294901760
          %v581 = vsub.f32 %v579, %v580
          %v582 = vand.u32 %v581, 4294901760
          %583 = vmatpush1.msra.mxu0 %v582
          %584 = vmatprep.subr.mxu0 0.0
          %v585 = vand.u32 %v278, 4294901760
          %v586 = vsub.f32 %v278, %v585
          %v587 = vand.u32 %v586, 4294901760
          %v588 = vsub.f32 %v586, %v587
          %v589 = vand.u32 %v588, 4294901760
          %590 = vmatpush1.msra.mxu0 %v589
          %591 = vmatprep.subr.mxu0 0.0
          %v592 = vand.u32 %v279, 4294901760
          %v593 = vsub.f32 %v279, %v592
          %v594 = vand.u32 %v593, 4294901760
          %v595 = vsub.f32 %v593, %v594
          %v596 = vand.u32 %v595, 4294901760
          %597 = vmatpush1.msra.mxu0 %v596
          %598 = vmatprep.subr.mxu0 0.0
          %v599 = vand.u32 %v280, 4294901760
          %v600 = vsub.f32 %v280, %v599
          %v601 = vand.u32 %v600, 4294901760
          %v602 = vsub.f32 %v600, %v601
          %v603 = vand.u32 %v602, 4294901760
          %604 = vmatpush1.msra.mxu0 %v603
          %605 = vmatprep.subr.mxu0 0.0
          %v606 = vand.u32 %v281, 4294901760
          %v607 = vsub.f32 %v281, %v606
          %v608 = vand.u32 %v607, 4294901760
          %v609 = vsub.f32 %v607, %v608
          %v610 = vand.u32 %v609, 4294901760
          %611 = vmatpush1.msra.mxu0 %v610
          %612 = vmatprep.subr.mxu0 0.0
          %v613 = vand.u32 %v282, 4294901760
          %v614 = vsub.f32 %v282, %v613
          %v615 = vand.u32 %v614, 4294901760
          %v616 = vsub.f32 %v614, %v615
          %v617 = vand.u32 %v616, 4294901760
          %618 = vmatpush1.msra.mxu0 %v617
          %619 = vmatprep.subr.mxu0 0.0
          %v620 = vand.u32 %v283, 4294901760
          %v621 = vsub.f32 %v283, %v620
          %v622 = vand.u32 %v621, 4294901760
          %v623 = vsub.f32 %v621, %v622
          %v624 = vand.u32 %v623, 4294901760
          %625 = vmatpush1.msra.mxu0 %v624
          %626 = vmatprep.subr.mxu0 0.0
          %v627 = vand.u32 %v284, 4294901760
          %v628 = vsub.f32 %v284, %v627
          %v629 = vand.u32 %v628, 4294901760
          %v630 = vsub.f32 %v628, %v629
          %v631 = vand.u32 %v630, 4294901760
          %632 = vmatpush1.msra.mxu0 %v631
          %v633 = vand.u32 %v294, 4294901760
          %634 = vmatprep.mubr.f32.mxu0 %v633
          %v635 = vand.u32 %v293, 4294901760
          %636 = vmatmul.mubr.f32.gmra.mrb[0].mxu0 %v635
          %v637 = vpop.f32.mrb[0].mxu0
          %v638 = vadd.f32 %v406, %v637
          %v639 = vpop.f32.mrb[0].mxu0
          %640 = vdwg.mxu0
          %641 = vmatprep.subr.mxu0 0.0
          %v642 = vand.u32 %v253, 4294901760
          %v643 = vsub.f32 %v253, %v642
          %644 = vmatpush1.msra.mxu0 %v643
          %645 = vmatprep.subr.mxu0 0.0
          %v646 = vand.u32 %v254, 4294901760
          %v647 = vsub.f32 %v254, %v646
          %648 = vmatpush1.msra.mxu0 %v647
          %649 = vmatprep.subr.mxu0 0.0
          %v650 = vand.u32 %v255, 4294901760
          %v651 = vsub.f32 %v255, %v650
          %652 = vmatpush1.msra.mxu0 %v651
          %653 = vmatprep.subr.mxu0 0.0
          %v654 = vand.u32 %v256, 4294901760
          %v655 = vsub.f32 %v256, %v654
          %656 = vmatpush1.msra.mxu0 %v655
          %657 = vmatprep.subr.mxu0 0.0
          %v658 = vand.u32 %v257, 4294901760
          %v659 = vsub.f32 %v257, %v658
          %660 = vmatpush1.msra.mxu0 %v659
          %661 = vmatprep.subr.mxu0 0.0
          %v662 = vand.u32 %v258, 4294901760
          %v663 = vsub.f32 %v258, %v662
          %664 = vmatpush1.msra.mxu0 %v663
          %665 = vmatprep.subr.mxu0 0.0
          %v666 = vand.u32 %v259, 4294901760
          %v667 = vsub.f32 %v259, %v666
          %668 = vmatpush1.msra.mxu0 %v667
          %669 = vmatprep.subr.mxu0 0.0
          %v670 = vand.u32 %v260, 4294901760
          %v671 = vsub.f32 %v260, %v670
          %672 = vmatpush1.msra.mxu0 %v671
          %673 = vmatprep.subr.mxu0 0.0
          %v674 = vand.u32 %v261, 4294901760
          %v675 = vsub.f32 %v261, %v674
          %676 = vmatpush1.msra.mxu0 %v675
          %677 = vmatprep.subr.mxu0 0.0
          %v678 = vand.u32 %v262, 4294901760
          %v679 = vsub.f32 %v262, %v678
          %680 = vmatpush1.msra.mxu0 %v679
          %681 = vmatprep.subr.mxu0 0.0
          %v682 = vand.u32 %v263, 4294901760
          %v683 = vsub.f32 %v263, %v682
          %684 = vmatpush1.msra.mxu0 %v683
          %685 = vmatprep.subr.mxu0 0.0
          %v686 = vand.u32 %v264, 4294901760
          %v687 = vsub.f32 %v264, %v686
          %688 = vmatpush1.msra.mxu0 %v687
          %689 = vmatprep.subr.mxu0 0.0
          %v690 = vand.u32 %v265, 4294901760
          %v691 = vsub.f32 %v265, %v690
          %692 = vmatpush1.msra.mxu0 %v691
          %693 = vmatprep.subr.mxu0 0.0
          %v694 = vand.u32 %v266, 4294901760
          %v695 = vsub.f32 %v266, %v694
          %696 = vmatpush1.msra.mxu0 %v695
          %697 = vmatprep.subr.mxu0 0.0
          %v698 = vand.u32 %v267, 4294901760
          %v699 = vsub.f32 %v267, %v698
          %700 = vmatpush1.msra.mxu0 %v699
          %701 = vmatprep.subr.mxu0 0.0
          %v702 = vand.u32 %v268, 4294901760
          %v703 = vsub.f32 %v268, %v702
          %704 = vmatpush1.msra.mxu0 %v703
          %705 = vmatprep.subr.mxu0 0.0
          %v706 = vand.u32 %v269, 4294901760
          %v707 = vsub.f32 %v269, %v706
          %708 = vmatpush1.msra.mxu0 %v707
          %709 = vmatprep.subr.mxu0 0.0
          %v710 = vand.u32 %v270, 4294901760
          %v711 = vsub.f32 %v270, %v710
          %712 = vmatpush1.msra.mxu0 %v711
          %713 = vmatprep.subr.mxu0 0.0
          %v714 = vand.u32 %v271, 4294901760
          %v715 = vsub.f32 %v271, %v714
          %716 = vmatpush1.msra.mxu0 %v715
          %717 = vmatprep.subr.mxu0 0.0
          %v718 = vand.u32 %v272, 4294901760
          %v719 = vsub.f32 %v272, %v718
          %720 = vmatpush1.msra.mxu0 %v719
          %721 = vmatprep.subr.mxu0 0.0
          %v722 = vand.u32 %v273, 4294901760
          %v723 = vsub.f32 %v273, %v722
          %724 = vmatpush1.msra.mxu0 %v723
          %725 = vmatprep.subr.mxu0 0.0
          %v726 = vand.u32 %v274, 4294901760
          %v727 = vsub.f32 %v274, %v726
          %728 = vmatpush1.msra.mxu0 %v727
          %729 = vmatprep.subr.mxu0 0.0
          %v730 = vand.u32 %v275, 4294901760
          %v731 = vsub.f32 %v275, %v730
          %732 = vmatpush1.msra.mxu0 %v731
          %733 = vmatprep.subr.mxu0 0.0
          %v734 = vand.u32 %v276, 4294901760
          %v735 = vsub.f32 %v276, %v734
          %736 = vmatpush1.msra.mxu0 %v735
          %737 = vmatprep.subr.mxu0 0.0
          %v738 = vand.u32 %v277, 4294901760
          %v739 = vsub.f32 %v277, %v738
          %740 = vmatpush1.msra.mxu0 %v739
          %741 = vmatprep.subr.mxu0 0.0
          %v742 = vand.u32 %v278, 4294901760
          %v743 = vsub.f32 %v278, %v742
          %744 = vmatpush1.msra.mxu0 %v743
          %745 = vmatprep.subr.mxu0 0.0
          %v746 = vand.u32 %v279, 4294901760
          %v747 = vsub.f32 %v279, %v746
          %748 = vmatpush1.msra.mxu0 %v747
          %749 = vmatprep.subr.mxu0 0.0
          %v750 = vand.u32 %v280, 4294901760
          %v751 = vsub.f32 %v280, %v750
          %752 = vmatpush1.msra.mxu0 %v751
          %753 = vmatprep.subr.mxu0 0.0
          %v754 = vand.u32 %v281, 4294901760
          %v755 = vsub.f32 %v281, %v754
          %756 = vmatpush1.msra.mxu0 %v755
          %757 = vmatprep.subr.mxu0 0.0
          %v758 = vand.u32 %v282, 4294901760
          %v759 = vsub.f32 %v282, %v758
          %760 = vmatpush1.msra.mxu0 %v759
          %761 = vmatprep.subr.mxu0 0.0
          %v762 = vand.u32 %v283, 4294901760
          %v763 = vsub.f32 %v283, %v762
          %764 = vmatpush1.msra.mxu0 %v763
          %765 = vmatprep.subr.mxu0 0.0
          %v766 = vand.u32 %v284, 4294901760
          %v767 = vsub.f32 %v284, %v766
          %768 = vmatpush1.msra.mxu0 %v767
          %v769 = vand.u32 %v294, 4294901760
          %v770 = vsub.f32 %v294, %v769
          %771 = vmatprep.mubr.f32.mxu0 %v770
          %v772 = vand.u32 %v293, 4294901760
          %v773 = vsub.f32 %v293, %v772
          %774 = vmatmul.mubr.f32.gmra.mrb[0].mxu0 %v773
          %v775 = vpop.f32.mrb[0].mxu0
          %v776 = vadd.f32 %v638, %v775
          %v777 = vpop.f32.mrb[0].mxu0
          %778 = vdwg.mxu0
          %779 = vmatprep.subr.mxu0 0.0
          %v780 = vand.u32 %v253, 4294901760
          %781 = vmatpush1.msra.mxu0 %v780
          %782 = vmatprep.subr.mxu0 0.0
          %v783 = vand.u32 %v254, 4294901760
          %784 = vmatpush1.msra.mxu0 %v783
          %785 = vmatprep.subr.mxu0 0.0
          %v786 = vand.u32 %v255, 4294901760
          %787 = vmatpush1.msra.mxu0 %v786
          %788 = vmatprep.subr.mxu0 0.0
          %v789 = vand.u32 %v256, 4294901760
          %790 = vmatpush1.msra.mxu0 %v789
          %791 = vmatprep.subr.mxu0 0.0
          %v792 = vand.u32 %v257, 4294901760
          %793 = vmatpush1.msra.mxu0 %v792
          %794 = vmatprep.subr.mxu0 0.0
          %v795 = vand.u32 %v258, 4294901760
          %796 = vmatpush1.msra.mxu0 %v795
          %797 = vmatprep.subr.mxu0 0.0
          %v798 = vand.u32 %v259, 4294901760
          %799 = vmatpush1.msra.mxu0 %v798
          %800 = vmatprep.subr.mxu0 0.0
          %v801 = vand.u32 %v260, 4294901760
          %802 = vmatpush1.msra.mxu0 %v801
          %803 = vmatprep.subr.mxu0 0.0
          %v804 = vand.u32 %v261, 4294901760
          %805 = vmatpush1.msra.mxu0 %v804
          %806 = vmatprep.subr.mxu0 0.0
          %v807 = vand.u32 %v262, 4294901760
          %808 = vmatpush1.msra.mxu0 %v807
          %809 = vmatprep.subr.mxu0 0.0
          %v810 = vand.u32 %v263, 4294901760
          %811 = vmatpush1.msra.mxu0 %v810
          %812 = vmatprep.subr.mxu0 0.0
          %v813 = vand.u32 %v264, 4294901760
          %814 = vmatpush1.msra.mxu0 %v813
          %815 = vmatprep.subr.mxu0 0.0
          %v816 = vand.u32 %v265, 4294901760
          %817 = vmatpush1.msra.mxu0 %v816
          %818 = vmatprep.subr.mxu0 0.0
          %v819 = vand.u32 %v266, 4294901760
          %820 = vmatpush1.msra.mxu0 %v819
          %821 = vmatprep.subr.mxu0 0.0
          %v822 = vand.u32 %v267, 4294901760
          %823 = vmatpush1.msra.mxu0 %v822
          %824 = vmatprep.subr.mxu0 0.0
          %v825 = vand.u32 %v268, 4294901760
          %826 = vmatpush1.msra.mxu0 %v825
          %827 = vmatprep.subr.mxu0 0.0
          %v828 = vand.u32 %v269, 4294901760
          %829 = vmatpush1.msra.mxu0 %v828
          %830 = vmatprep.subr.mxu0 0.0
          %v831 = vand.u32 %v270, 4294901760
          %832 = vmatpush1.msra.mxu0 %v831
          %833 = vmatprep.subr.mxu0 0.0
          %v834 = vand.u32 %v271, 4294901760
          %835 = vmatpush1.msra.mxu0 %v834
          %836 = vmatprep.subr.mxu0 0.0
          %v837 = vand.u32 %v272, 4294901760
          %838 = vmatpush1.msra.mxu0 %v837
          %839 = vmatprep.subr.mxu0 0.0
          %v840 = vand.u32 %v273, 4294901760
          %841 = vmatpush1.msra.mxu0 %v840
          %842 = vmatprep.subr.mxu0 0.0
          %v843 = vand.u32 %v274, 4294901760
          %844 = vmatpush1.msra.mxu0 %v843
          %845 = vmatprep.subr.mxu0 0.0
          %v846 = vand.u32 %v275, 4294901760
          %847 = vmatpush1.msra.mxu0 %v846
          %848 = vmatprep.subr.mxu0 0.0
          %v849 = vand.u32 %v276, 4294901760
          %850 = vmatpush1.msra.mxu0 %v849
          %851 = vmatprep.subr.mxu0 0.0
          %v852 = vand.u32 %v277, 4294901760
          %853 = vmatpush1.msra.mxu0 %v852
          %854 = vmatprep.subr.mxu0 0.0
          %v855 = vand.u32 %v278, 4294901760
          %856 = vmatpush1.msra.mxu0 %v855
          %857 = vmatprep.subr.mxu0 0.0
          %v858 = vand.u32 %v279, 4294901760
          %859 = vmatpush1.msra.mxu0 %v858
          %860 = vmatprep.subr.mxu0 0.0
          %v861 = vand.u32 %v280, 4294901760
          %862 = vmatpush1.msra.mxu0 %v861
          %863 = vmatprep.subr.mxu0 0.0
          %v864 = vand.u32 %v281, 4294901760
          %865 = vmatpush1.msra.mxu0 %v864
          %866 = vmatprep.subr.mxu0 0.0
          %v867 = vand.u32 %v282, 4294901760
          %868 = vmatpush1.msra.mxu0 %v867
          %869 = vmatprep.subr.mxu0 0.0
          %v870 = vand.u32 %v283, 4294901760
          %871 = vmatpush1.msra.mxu0 %v870
          %872 = vmatprep.subr.mxu0 0.0
          %v873 = vand.u32 %v284, 4294901760
          %874 = vmatpush1.msra.mxu0 %v873
          %v875 = vand.u32 %v294, 4294901760
          %v876 = vsub.f32 %v294, %v875
          %v877 = vand.u32 %v876, 4294901760
          %878 = vmatprep.mubr.f32.mxu0 %v877
          %v879 = vand.u32 %v293, 4294901760
          %v880 = vsub.f32 %v293, %v879
          %v881 = vand.u32 %v880, 4294901760
          %882 = vmatmul.mubr.f32.gmra.mrb[0].mxu0 %v881
          %v883 = vpop.f32.mrb[0].mxu0
          %v884 = vadd.f32 %v776, %v883
          %v885 = vpop.f32.mrb[0].mxu0
          %886 = vdwg.mxu0
          %887 = vmatprep.subr.mxu0 0.0
          %v888 = vand.u32 %v253, 4294901760
          %v889 = vsub.f32 %v253, %v888
          %v890 = vand.u32 %v889, 4294901760
          %891 = vmatpush1.msra.mxu0 %v890
          %892 = vmatprep.subr.mxu0 0.0
          %v893 = vand.u32 %v254, 4294901760
          %v894 = vsub.f32 %v254, %v893
          %v895 = vand.u32 %v894, 4294901760
          %896 = vmatpush1.msra.mxu0 %v895
          %897 = vmatprep.subr.mxu0 0.0
          %v898 = vand.u32 %v255, 4294901760
          %v899 = vsub.f32 %v255, %v898
          %v900 = vand.u32 %v899, 4294901760
          %901 = vmatpush1.msra.mxu0 %v900
          %902 = vmatprep.subr.mxu0 0.0
          %v903 = vand.u32 %v256, 4294901760
          %v904 = vsub.f32 %v256, %v903
          %v905 = vand.u32 %v904, 4294901760
          %906 = vmatpush1.msra.mxu0 %v905
          %907 = vmatprep.subr.mxu0 0.0
          %v908 = vand.u32 %v257, 4294901760
          %v909 = vsub.f32 %v257, %v908
          %v910 = vand.u32 %v909, 4294901760
          %911 = vmatpush1.msra.mxu0 %v910
          %912 = vmatprep.subr.mxu0 0.0
          %v913 = vand.u32 %v258, 4294901760
          %v914 = vsub.f32 %v258, %v913
          %v915 = vand.u32 %v914, 4294901760
          %916 = vmatpush1.msra.mxu0 %v915
          %917 = vmatprep.subr.mxu0 0.0
          %v918 = vand.u32 %v259, 4294901760
          %v919 = vsub.f32 %v259, %v918
          %v920 = vand.u32 %v919, 4294901760
          %921 = vmatpush1.msra.mxu0 %v920
          %922 = vmatprep.subr.mxu0 0.0
          %v923 = vand.u32 %v260, 4294901760
          %v924 = vsub.f32 %v260, %v923
          %v925 = vand.u32 %v924, 4294901760
          %926 = vmatpush1.msra.mxu0 %v925
          %927 = vmatprep.subr.mxu0 0.0
          %v928 = vand.u32 %v261, 4294901760
          %v929 = vsub.f32 %v261, %v928
          %v930 = vand.u32 %v929, 4294901760
          %931 = vmatpush1.msra.mxu0 %v930
          %932 = vmatprep.subr.mxu0 0.0
          %v933 = vand.u32 %v262, 4294901760
          %v934 = vsub.f32 %v262, %v933
          %v935 = vand.u32 %v934, 4294901760
          %936 = vmatpush1.msra.mxu0 %v935
          %937 = vmatprep.subr.mxu0 0.0
          %v938 = vand.u32 %v263, 4294901760
          %v939 = vsub.f32 %v263, %v938
          %v940 = vand.u32 %v939, 4294901760
          %941 = vmatpush1.msra.mxu0 %v940
          %942 = vmatprep.subr.mxu0 0.0
          %v943 = vand.u32 %v264, 4294901760
          %v944 = vsub.f32 %v264, %v943
          %v945 = vand.u32 %v944, 4294901760
          %946 = vmatpush1.msra.mxu0 %v945
          %947 = vmatprep.subr.mxu0 0.0
          %v948 = vand.u32 %v265, 4294901760
          %v949 = vsub.f32 %v265, %v948
          %v950 = vand.u32 %v949, 4294901760
          %951 = vmatpush1.msra.mxu0 %v950
          %952 = vmatprep.subr.mxu0 0.0
          %v953 = vand.u32 %v266, 4294901760
          %v954 = vsub.f32 %v266, %v953
          %v955 = vand.u32 %v954, 4294901760
          %956 = vmatpush1.msra.mxu0 %v955
          %957 = vmatprep.subr.mxu0 0.0
          %v958 = vand.u32 %v267, 4294901760
          %v959 = vsub.f32 %v267, %v958
          %v960 = vand.u32 %v959, 4294901760
          %961 = vmatpush1.msra.mxu0 %v960
          %962 = vmatprep.subr.mxu0 0.0
          %v963 = vand.u32 %v268, 4294901760
          %v964 = vsub.f32 %v268, %v963
          %v965 = vand.u32 %v964, 4294901760
          %966 = vmatpush1.msra.mxu0 %v965
          %967 = vmatprep.subr.mxu0 0.0
          %v968 = vand.u32 %v269, 4294901760
          %v969 = vsub.f32 %v269, %v968
          %v970 = vand.u32 %v969, 4294901760
          %971 = vmatpush1.msra.mxu0 %v970
          %972 = vmatprep.subr.mxu0 0.0
          %v973 = vand.u32 %v270, 4294901760
          %v974 = vsub.f32 %v270, %v973
          %v975 = vand.u32 %v974, 4294901760
          %976 = vmatpush1.msra.mxu0 %v975
          %977 = vmatprep.subr.mxu0 0.0
          %v978 = vand.u32 %v271, 4294901760
          %v979 = vsub.f32 %v271, %v978
          %v980 = vand.u32 %v979, 4294901760
          %981 = vmatpush1.msra.mxu0 %v980
          %982 = vmatprep.subr.mxu0 0.0
          %v983 = vand.u32 %v272, 4294901760
          %v984 = vsub.f32 %v272, %v983
          %v985 = vand.u32 %v984, 4294901760
          %986 = vmatpush1.msra.mxu0 %v985
          %987 = vmatprep.subr.mxu0 0.0
          %v988 = vand.u32 %v273, 4294901760
          %v989 = vsub.f32 %v273, %v988
          %v990 = vand.u32 %v989, 4294901760
          %991 = vmatpush1.msra.mxu0 %v990
          %992 = vmatprep.subr.mxu0 0.0
          %v993 = vand.u32 %v274, 4294901760
          %v994 = vsub.f32 %v274, %v993
          %v995 = vand.u32 %v994, 4294901760
          %996 = vmatpush1.msra.mxu0 %v995
          %997 = vmatprep.subr.mxu0 0.0
          %v998 = vand.u32 %v275, 4294901760
          %v999 = vsub.f32 %v275, %v998
          %v1000 = vand.u32 %v999, 4294901760
          %1001 = vmatpush1.msra.mxu0 %v1000
          %1002 = vmatprep.subr.mxu0 0.0
          %v1003 = vand.u32 %v276, 4294901760
          %v1004 = vsub.f32 %v276, %v1003
          %v1005 = vand.u32 %v1004, 4294901760
          %1006 = vmatpush1.msra.mxu0 %v1005
          %1007 = vmatprep.subr.mxu0 0.0
          %v1008 = vand.u32 %v277, 4294901760
          %v1009 = vsub.f32 %v277, %v1008
          %v1010 = vand.u32 %v1009, 4294901760
          %1011 = vmatpush1.msra.mxu0 %v1010
          %1012 = vmatprep.subr.mxu0 0.0
          %v1013 = vand.u32 %v278, 4294901760
          %v1014 = vsub.f32 %v278, %v1013
          %v1015 = vand.u32 %v1014, 4294901760
          %1016 = vmatpush1.msra.mxu0 %v1015
          %1017 = vmatprep.subr.mxu0 0.0
          %v1018 = vand.u32 %v279, 4294901760
          %v1019 = vsub.f32 %v279, %v1018
          %v1020 = vand.u32 %v1019, 4294901760
          %1021 = vmatpush1.msra.mxu0 %v1020
          %1022 = vmatprep.subr.mxu0 0.0
          %v1023 = vand.u32 %v280, 4294901760
          %v1024 = vsub.f32 %v280, %v1023
          %v1025 = vand.u32 %v1024, 4294901760
          %1026 = vmatpush1.msra.mxu0 %v1025
          %1027 = vmatprep.subr.mxu0 0.0
          %v1028 = vand.u32 %v281, 4294901760
          %v1029 = vsub.f32 %v281, %v1028
          %v1030 = vand.u32 %v1029, 4294901760
          %1031 = vmatpush1.msra.mxu0 %v1030
          %1032 = vmatprep.subr.mxu0 0.0
          %v1033 = vand.u32 %v282, 4294901760
          %v1034 = vsub.f32 %v282, %v1033
          %v1035 = vand.u32 %v1034, 4294901760
          %1036 = vmatpush1.msra.mxu0 %v1035
          %1037 = vmatprep.subr.mxu0 0.0
          %v1038 = vand.u32 %v283, 4294901760
          %v1039 = vsub.f32 %v283, %v1038
          %v1040 = vand.u32 %v1039, 4294901760
          %1041 = vmatpush1.msra.mxu0 %v1040
          %1042 = vmatprep.subr.mxu0 0.0
          %v1043 = vand.u32 %v284, 4294901760
          %v1044 = vsub.f32 %v284, %v1043
          %v1045 = vand.u32 %v1044, 4294901760
          %1046 = vmatpush1.msra.mxu0 %v1045
          %v1047 = vand.u32 %v294, 4294901760
          %1048 = vmatprep.mubr.f32.mxu0 %v1047
          %v1049 = vand.u32 %v293, 4294901760
          %1050 = vmatmul.mubr.f32.gmra.mrb[0].mxu0 %v1049
          %v1051 = vpop.f32.mrb[0].mxu0
          %v1052 = vadd.f32 %v884, %v1051
          %v1053 = vpop.f32.mrb[0].mxu0
          %1054 = vdwg.mxu0
          %1055 = vmatprep.subr.mxu0 0.0
          %v1056 = vand.u32 %v253, 4294901760
          %1057 = vmatpush1.msra.mxu0 %v1056
          %1058 = vmatprep.subr.mxu0 0.0
          %v1059 = vand.u32 %v254, 4294901760
          %1060 = vmatpush1.msra.mxu0 %v1059
          %1061 = vmatprep.subr.mxu0 0.0
          %v1062 = vand.u32 %v255, 4294901760
          %1063 = vmatpush1.msra.mxu0 %v1062
          %1064 = vmatprep.subr.mxu0 0.0
          %v1065 = vand.u32 %v256, 4294901760
          %1066 = vmatpush1.msra.mxu0 %v1065
          %1067 = vmatprep.subr.mxu0 0.0
          %v1068 = vand.u32 %v257, 4294901760
          %1069 = vmatpush1.msra.mxu0 %v1068
          %1070 = vmatprep.subr.mxu0 0.0
          %v1071 = vand.u32 %v258, 4294901760
          %1072 = vmatpush1.msra.mxu0 %v1071
          %1073 = vmatprep.subr.mxu0 0.0
          %v1074 = vand.u32 %v259, 4294901760
          %1075 = vmatpush1.msra.mxu0 %v1074
          %1076 = vmatprep.subr.mxu0 0.0
          %v1077 = vand.u32 %v260, 4294901760
          %1078 = vmatpush1.msra.mxu0 %v1077
          %1079 = vmatprep.subr.mxu0 0.0
          %v1080 = vand.u32 %v261, 4294901760
          %1081 = vmatpush1.msra.mxu0 %v1080
          %1082 = vmatprep.subr.mxu0 0.0
          %v1083 = vand.u32 %v262, 4294901760
          %1084 = vmatpush1.msra.mxu0 %v1083
          %1085 = vmatprep.subr.mxu0 0.0
          %v1086 = vand.u32 %v263, 4294901760
          %1087 = vmatpush1.msra.mxu0 %v1086
          %1088 = vmatprep.subr.mxu0 0.0
          %v1089 = vand.u32 %v264, 4294901760
          %1090 = vmatpush1.msra.mxu0 %v1089
          %1091 = vmatprep.subr.mxu0 0.0
          %v1092 = vand.u32 %v265, 4294901760
          %1093 = vmatpush1.msra.mxu0 %v1092
          %1094 = vmatprep.subr.mxu0 0.0
          %v1095 = vand.u32 %v266, 4294901760
          %1096 = vmatpush1.msra.mxu0 %v1095
          %1097 = vmatprep.subr.mxu0 0.0
          %v1098 = vand.u32 %v267, 4294901760
          %1099 = vmatpush1.msra.mxu0 %v1098
          %1100 = vmatprep.subr.mxu0 0.0
          %v1101 = vand.u32 %v268, 4294901760
          %1102 = vmatpush1.msra.mxu0 %v1101
          %1103 = vmatprep.subr.mxu0 0.0
          %v1104 = vand.u32 %v269, 4294901760
          %1105 = vmatpush1.msra.mxu0 %v1104
          %1106 = vmatprep.subr.mxu0 0.0
          %v1107 = vand.u32 %v270, 4294901760
          %1108 = vmatpush1.msra.mxu0 %v1107
          %1109 = vmatprep.subr.mxu0 0.0
          %v1110 = vand.u32 %v271, 4294901760
          %1111 = vmatpush1.msra.mxu0 %v1110
          %1112 = vmatprep.subr.mxu0 0.0
          %v1113 = vand.u32 %v272, 4294901760
          %1114 = vmatpush1.msra.mxu0 %v1113
          %1115 = vmatprep.subr.mxu0 0.0
          %v1116 = vand.u32 %v273, 4294901760
          %1117 = vmatpush1.msra.mxu0 %v1116
          %1118 = vmatprep.subr.mxu0 0.0
          %v1119 = vand.u32 %v274, 4294901760
          %1120 = vmatpush1.msra.mxu0 %v1119
          %1121 = vmatprep.subr.mxu0 0.0
          %v1122 = vand.u32 %v275, 4294901760
          %1123 = vmatpush1.msra.mxu0 %v1122
          %1124 = vmatprep.subr.mxu0 0.0
          %v1125 = vand.u32 %v276, 4294901760
          %1126 = vmatpush1.msra.mxu0 %v1125
          %1127 = vmatprep.subr.mxu0 0.0
          %v1128 = vand.u32 %v277, 4294901760
          %1129 = vmatpush1.msra.mxu0 %v1128
          %1130 = vmatprep.subr.mxu0 0.0
          %v1131 = vand.u32 %v278, 4294901760
          %1132 = vmatpush1.msra.mxu0 %v1131
          %1133 = vmatprep.subr.mxu0 0.0
          %v1134 = vand.u32 %v279, 4294901760
          %1135 = vmatpush1.msra.mxu0 %v1134
          %1136 = vmatprep.subr.mxu0 0.0
          %v1137 = vand.u32 %v280, 4294901760
          %1138 = vmatpush1.msra.mxu0 %v1137
          %1139 = vmatprep.subr.mxu0 0.0
          %v1140 = vand.u32 %v281, 4294901760
          %1141 = vmatpush1.msra.mxu0 %v1140
          %1142 = vmatprep.subr.mxu0 0.0
          %v1143 = vand.u32 %v282, 4294901760
          %1144 = vmatpush1.msra.mxu0 %v1143
          %1145 = vmatprep.subr.mxu0 0.0
          %v1146 = vand.u32 %v283, 4294901760
          %1147 = vmatpush1.msra.mxu0 %v1146
          %1148 = vmatprep.subr.mxu0 0.0
          %v1149 = vand.u32 %v284, 4294901760
          %1150 = vmatpush1.msra.mxu0 %v1149
          %v1151 = vand.u32 %v294, 4294901760
          %1152 = vmatprep.mubr.f32.mxu0 %v1151
          %v1153 = vand.u32 %v293, 4294901760
          %1154 = vmatmul.mubr.f32.gmra.mrb[0].mxu0 %v1153
          %v1155 = vpop.f32.mrb[0].mxu0
          %v1156 = vadd.f32 %v1052, %v1155
          %v1157 = vpop.f32.mrb[0].mxu0
          %1158 = vdwg.mxu0
          %v1159 = vadd.f32 %v285, %v1156
          %1160 = vst [vmem:[#allocation2] sm:$0x3] %v1159
        $region44: #{tpu_custom_call.1} parent=27 // pred_fallthru
          _
        %p1161 = scmp.gt.s32.totalorder %s247, 0
        %p1162 = scmp.lt.s32.totalorder %s247, 256
        %p1163 = pnand %p1161, %p1162
        %p1164 = pneg %p1163
        // Predicated region
        $region45: #{tpu_custom_call.1} parent=27 // pred_check
          _
        $region46: #{tpu_custom_call.1} parent=27 // pred_check_branch
          %1166 = sbr.rel (%p1163) target = $region48
        $region47: #{tpu_custom_call.1} parent=27 // pred_region
          %v1167 = vlaneseq
          %v1168 = vshrl.u32 %v1167, 7
          %v1169 = vadd.s32 %v1168, 8
          %v1170 = vadd.s32 %v1168, 16
          %v1171 = vadd.s32 %v1168, 24
          %v1172 = vadd.s32 %v1168, 32
          %v1173 = vadd.s32 %v1168, 40
          %v1174 = vadd.s32 %v1168, 48
          %v1175 = vadd.s32 %v1168, 56
          %v1176 = vadd.s32 %v1168, 64
          %v1177 = vadd.s32 %v1168, 72
          %v1178 = vadd.s32 %v1168, 80
          %v1179 = vadd.s32 %v1168, 88
          %v1180 = vadd.s32 %v1168, 96
          %v1181 = vadd.s32 %v1168, 104
          %v1182 = vadd.s32 %v1168, 112
          %v1183 = vadd.s32 %v1168, 120
          %v1184 = vadd.s32 %v1168, 128
          %v1185 = vadd.s32 %v1168, 136
          %v1186 = vadd.s32 %v1168, 144
          %v1187 = vadd.s32 %v1168, 152
          %v1188 = vadd.s32 %v1168, 160
          %v1189 = vadd.s32 %v1168, 168
          %v1190 = vadd.s32 %v1168, 176
          %v1191 = vadd.s32 %v1168, 184
          %v1192 = vadd.s32 %v1168, 192
          %v1193 = vadd.s32 %v1168, 200
          %v1194 = vadd.s32 %v1168, 208
          %v1195 = vadd.s32 %v1168, 216
          %v1196 = vadd.s32 %v1168, 224
          %v1197 = vadd.s32 %v1168, 232
          %v1198 = vadd.s32 %v1168, 240
          %v1199 = vadd.s32 %v1168, 248
          %v1200 = vstv %s247
          %vm1201 = vcmp.lt.s32.totalorder %v1168, %v1200
          %vm1202 = vcmp.lt.s32.totalorder %v1169, %v1200
          %vm1203 = vcmp.lt.s32.totalorder %v1170, %v1200
          %vm1204 = vcmp.lt.s32.totalorder %v1171, %v1200
          %vm1205 = vcmp.lt.s32.totalorder %v1172, %v1200
          %vm1206 = vcmp.lt.s32.totalorder %v1173, %v1200
          %vm1207 = vcmp.lt.s32.totalorder %v1174, %v1200
          %vm1208 = vcmp.lt.s32.totalorder %v1175, %v1200
          %vm1209 = vcmp.lt.s32.totalorder %v1176, %v1200
          %vm1210 = vcmp.lt.s32.totalorder %v1177, %v1200
          %vm1211 = vcmp.lt.s32.totalorder %v1178, %v1200
          %vm1212 = vcmp.lt.s32.totalorder %v1179, %v1200
          %vm1213 = vcmp.lt.s32.totalorder %v1180, %v1200
          %vm1214 = vcmp.lt.s32.totalorder %v1181, %v1200
          %vm1215 = vcmp.lt.s32.totalorder %v1182, %v1200
          %vm1216 = vcmp.lt.s32.totalorder %v1183, %v1200
          %vm1217 = vcmp.lt.s32.totalorder %v1184, %v1200
          %vm1218 = vcmp.lt.s32.totalorder %v1185, %v1200
          %vm1219 = vcmp.lt.s32.totalorder %v1186, %v1200
          %vm1220 = vcmp.lt.s32.totalorder %v1187, %v1200
          %vm1221 = vcmp.lt.s32.totalorder %v1188, %v1200
          %vm1222 = vcmp.lt.s32.totalorder %v1189, %v1200
          %vm1223 = vcmp.lt.s32.totalorder %v1190, %v1200
          %vm1224 = vcmp.lt.s32.totalorder %v1191, %v1200
          %vm1225 = vcmp.lt.s32.totalorder %v1192, %v1200
          %vm1226 = vcmp.lt.s32.totalorder %v1193, %v1200
          %vm1227 = vcmp.lt.s32.totalorder %v1194, %v1200
          %vm1228 = vcmp.lt.s32.totalorder %v1195, %v1200
          %vm1229 = vcmp.lt.s32.totalorder %v1196, %v1200
          %vm1230 = vcmp.lt.s32.totalorder %v1197, %v1200
          %vm1231 = vcmp.lt.s32.totalorder %v1198, %v1200
          %vm1232 = vcmp.lt.s32.totalorder %v1199, %v1200
          %v1233 = vld [vmem:[%s204] sm:$0xff]
          %v1234 = vld [vmem:[%s204 + $0x8] sm:$0xff]
          %v1235 = vld [vmem:[%s204 + $0x10] sm:$0xff]
          %v1236 = vld [vmem:[%s204 + $0x18] sm:$0xff]
          %v1237 = vld [vmem:[%s204 + $0x20] sm:$0xff]
          %v1238 = vld [vmem:[%s204 + $0x28] sm:$0xff]
          %v1239 = vld [vmem:[%s204 + $0x30] sm:$0xff]
          %v1240 = vld [vmem:[%s204 + $0x38] sm:$0xff]
          %v1241 = vld [vmem:[%s204 + $0x40] sm:$0xff]
          %v1242 = vld [vmem:[%s204 + $0x48] sm:$0xff]
          %v1243 = vld [vmem:[%s204 + $0x50] sm:$0xff]
          %v1244 = vld [vmem:[%s204 + $0x58] sm:$0xff]
          %v1245 = vld [vmem:[%s204 + $0x60] sm:$0xff]
          %v1246 = vld [vmem:[%s204 + $0x68] sm:$0xff]
          %v1247 = vld [vmem:[%s204 + $0x70] sm:$0xff]
          %v1248 = vld [vmem:[%s204 + $0x78] sm:$0xff]
          %v1249 = vld [vmem:[%s204 + $0x80] sm:$0xff]
          %v1250 = vld [vmem:[%s204 + $0x88] sm:$0xff]
          %v1251 = vld [vmem:[%s204 + $0x90] sm:$0xff]
          %v1252 = vld [vmem:[%s204 + $0x98] sm:$0xff]
          %v1253 = vld [vmem:[%s204 + $0xa0] sm:$0xff]
          %v1254 = vld [vmem:[%s204 + $0xa8] sm:$0xff]
          %v1255 = vld [vmem:[%s204 + $0xb0] sm:$0xff]
          %v1256 = vld [vmem:[%s204 + $0xb8] sm:$0xff]
          %v1257 = vld [vmem:[%s204 + $0xc0] sm:$0xff]
          %v1258 = vld [vmem:[%s204 + $0xc8] sm:$0xff]
          %v1259 = vld [vmem:[%s204 + $0xd0] sm:$0xff]
          %v1260 = vld [vmem:[%s204 + $0xd8] sm:$0xff]
          %v1261 = vld [vmem:[%s204 + $0xe0] sm:$0xff]
          %v1262 = vld [vmem:[%s204 + $0xe8] sm:$0xff]
          %v1263 = vld [vmem:[%s204 + $0xf0] sm:$0xff]
          %v1264 = vld [vmem:[%s204 + $0xf8] sm:$0xff]
          %v1265 = vsel %vm1201, %v1233, 0.0
          %v1266 = vsel %vm1202, %v1234, 0.0
          %v1267 = vsel %vm1203, %v1235, 0.0
          %v1268 = vsel %vm1204, %v1236, 0.0
          %v1269 = vsel %vm1205, %v1237, 0.0
          %v1270 = vsel %vm1206, %v1238, 0.0
          %v1271 = vsel %vm1207, %v1239, 0.0
          %v1272 = vsel %vm1208, %v1240, 0.0
          %v1273 = vsel %vm1209, %v1241, 0.0
          %v1274 = vsel %vm1210, %v1242, 0.0
          %v1275 = vsel %vm1211, %v1243, 0.0
          %v1276 = vsel %vm1212, %v1244, 0.0
          %v1277 = vsel %vm1213, %v1245, 0.0
          %v1278 = vsel %vm1214, %v1246, 0.0
          %v1279 = vsel %vm1215, %v1247, 0.0
          %v1280 = vsel %vm1216, %v1248, 0.0
          %v1281 = vsel %vm1217, %v1249, 0.0
          %v1282 = vsel %vm1218, %v1250, 0.0
          %v1283 = vsel %vm1219, %v1251, 0.0
          %v1284 = vsel %vm1220, %v1252, 0.0
          %v1285 = vsel %vm1221, %v1253, 0.0
          %v1286 = vsel %vm1222, %v1254, 0.0
          %v1287 = vsel %vm1223, %v1255, 0.0
          %v1288 = vsel %vm1224, %v1256, 0.0
          %v1289 = vsel %vm1225, %v1257, 0.0
          %v1290 = vsel %vm1226, %v1258, 0.0
          %v1291 = vsel %vm1227, %v1259, 0.0
          %v1292 = vsel %vm1228, %v1260, 0.0
          %v1293 = vsel %vm1229, %v1261, 0.0
          %v1294 = vsel %vm1230, %v1262, 0.0
          %v1295 = vsel %vm1231, %v1263, 0.0
          %v1296 = vsel %vm1232, %v1264, 0.0
          %v1297 = vld [vmem:[#allocation2] sm:$0x3]
          %v1300 = vunpack.c.l.s4 1983009808
          %v1301 = vunpack.c.0.s8 %v1300
          %v1302 = vlaneseq
          %v1303 = vshrl.u32 %v1302, 7
          %v1304 = vsub.s32 %v1301, %v1303
          %v1305 = vrot.slane %v248, %v1304
          %v1306 = vcombine.high %v1305, %v1305
          %1309 = vmatprep.subr.mxu0 0.0
          %v1310 = vand.u32 %v1265, 4294901760
          %1311 = vmatpush1.msra.mxu0 %v1310
          %1312 = vmatprep.subr.mxu0 0.0
          %v1313 = vand.u32 %v1266, 4294901760
          %1314 = vmatpush1.msra.mxu0 %v1313
          %1315 = vmatprep.subr.mxu0 0.0
          %v1316 = vand.u32 %v1267, 4294901760
          %1317 = vmatpush1.msra.mxu0 %v1316
          %1318 = vmatprep.subr.mxu0 0.0
          %v1319 = vand.u32 %v1268, 4294901760
          %1320 = vmatpush1.msra.mxu0 %v1319
          %1321 = vmatprep.subr.mxu0 0.0
          %v1322 = vand.u32 %v1269, 4294901760
          %1323 = vmatpush1.msra.mxu0 %v1322
          %1324 = vmatprep.subr.mxu0 0.0
          %v1325 = vand.u32 %v1270, 4294901760
          %1326 = vmatpush1.msra.mxu0 %v1325
          %1327 = vmatprep.subr.mxu0 0.0
          %v1328 = vand.u32 %v1271, 4294901760
          %1329 = vmatpush1.msra.mxu0 %v1328
          %1330 = vmatprep.subr.mxu0 0.0
          %v1331 = vand.u32 %v1272, 4294901760
          %1332 = vmatpush1.msra.mxu0 %v1331
          %1333 = vmatprep.subr.mxu0 0.0
          %v1334 = vand.u32 %v1273, 4294901760
          %1335 = vmatpush1.msra.mxu0 %v1334
          %1336 = vmatprep.subr.mxu0 0.0
          %v1337 = vand.u32 %v1274, 4294901760
          %1338 = vmatpush1.msra.mxu0 %v1337
          %1339 = vmatprep.subr.mxu0 0.0
          %v1340 = vand.u32 %v1275, 4294901760
          %1341 = vmatpush1.msra.mxu0 %v1340
          %1342 = vmatprep.subr.mxu0 0.0
          %v1343 = vand.u32 %v1276, 4294901760
          %1344 = vmatpush1.msra.mxu0 %v1343
          %1345 = vmatprep.subr.mxu0 0.0
          %v1346 = vand.u32 %v1277, 4294901760
          %1347 = vmatpush1.msra.mxu0 %v1346
          %1348 = vmatprep.subr.mxu0 0.0
          %v1349 = vand.u32 %v1278, 4294901760
          %1350 = vmatpush1.msra.mxu0 %v1349
          %1351 = vmatprep.subr.mxu0 0.0
          %v1352 = vand.u32 %v1279, 4294901760
          %1353 = vmatpush1.msra.mxu0 %v1352
          %1354 = vmatprep.subr.mxu0 0.0
          %v1355 = vand.u32 %v1280, 4294901760
          %1356 = vmatpush1.msra.mxu0 %v1355
          %1357 = vmatprep.subr.mxu0 0.0
          %v1358 = vand.u32 %v1281, 4294901760
          %1359 = vmatpush1.msra.mxu0 %v1358
          %1360 = vmatprep.subr.mxu0 0.0
          %v1361 = vand.u32 %v1282, 4294901760
          %1362 = vmatpush1.msra.mxu0 %v1361
          %1363 = vmatprep.subr.mxu0 0.0
          %v1364 = vand.u32 %v1283, 4294901760
          %1365 = vmatpush1.msra.mxu0 %v1364
          %1366 = vmatprep.subr.mxu0 0.0
          %v1367 = vand.u32 %v1284, 4294901760
          %1368 = vmatpush1.msra.mxu0 %v1367
          %1369 = vmatprep.subr.mxu0 0.0
          %v1370 = vand.u32 %v1285, 4294901760
          %1371 = vmatpush1.msra.mxu0 %v1370
          %1372 = vmatprep.subr.mxu0 0.0
          %v1373 = vand.u32 %v1286, 4294901760
          %1374 = vmatpush1.msra.mxu0 %v1373
          %1375 = vmatprep.subr.mxu0 0.0
          %v1376 = vand.u32 %v1287, 4294901760
          %1377 = vmatpush1.msra.mxu0 %v1376
          %1378 = vmatprep.subr.mxu0 0.0
          %v1379 = vand.u32 %v1288, 4294901760
          %1380 = vmatpush1.msra.mxu0 %v1379
          %1381 = vmatprep.subr.mxu0 0.0
          %v1382 = vand.u32 %v1289, 4294901760
          %1383 = vmatpush1.msra.mxu0 %v1382
          %1384 = vmatprep.subr.mxu0 0.0
          %v1385 = vand.u32 %v1290, 4294901760
          %1386 = vmatpush1.msra.mxu0 %v1385
          %1387 = vmatprep.subr.mxu0 0.0
          %v1388 = vand.u32 %v1291, 4294901760
          %1389 = vmatpush1.msra.mxu0 %v1388
          %1390 = vmatprep.subr.mxu0 0.0
          %v1391 = vand.u32 %v1292, 4294901760
          %1392 = vmatpush1.msra.mxu0 %v1391
          %1393 = vmatprep.subr.mxu0 0.0
          %v1394 = vand.u32 %v1293, 4294901760
          %1395 = vmatpush1.msra.mxu0 %v1394
          %1396 = vmatprep.subr.mxu0 0.0
          %v1397 = vand.u32 %v1294, 4294901760
          %1398 = vmatpush1.msra.mxu0 %v1397
          %1399 = vmatprep.subr.mxu0 0.0
          %v1400 = vand.u32 %v1295, 4294901760
          %1401 = vmatpush1.msra.mxu0 %v1400
          %1402 = vmatprep.subr.mxu0 0.0
          %v1403 = vand.u32 %v1296, 4294901760
          %1404 = vmatpush1.msra.mxu0 %v1403
          %v1405 = vand.u32 %v1306, 4294901760
          %v1406 = vsub.f32 %v1306, %v1405
          %v1407 = vand.u32 %v1406, 4294901760
          %v1408 = vsub.f32 %v1406, %v1407
          %v1409 = vand.u32 %v1408, 4294901760
          %1410 = vmatprep.mubr.f32.mxu0 %v1409
          %v1411 = vand.u32 %v1305, 4294901760
          %v1412 = vsub.f32 %v1305, %v1411
          %v1413 = vand.u32 %v1412, 4294901760
          %v1414 = vsub.f32 %v1412, %v1413
          %v1415 = vand.u32 %v1414, 4294901760
          %1416 = vmatmul.mubr.f32.gmra.mrb[0].mxu0 %v1415
          %v1417 = vpop.f32.mrb[0].mxu0
          %v1418 = vadd.f32 0.0, %v1417
          %v1419 = vpop.f32.mrb[0].mxu0
          %1420 = vdwg.mxu0
          %1421 = vmatprep.subr.mxu0 0.0
          %v1422 = vand.u32 %v1265, 4294901760
          %v1423 = vsub.f32 %v1265, %v1422
          %v1424 = vand.u32 %v1423, 4294901760
          %v1425 = vsub.f32 %v1423, %v1424
          %v1426 = vand.u32 %v1425, 4294901760
          %1427 = vmatpush1.msra.mxu0 %v1426
          %1428 = vmatprep.subr.mxu0 0.0
          %v1429 = vand.u32 %v1266, 4294901760
          %v1430 = vsub.f32 %v1266, %v1429
          %v1431 = vand.u32 %v1430, 4294901760
          %v1432 = vsub.f32 %v1430, %v1431
          %v1433 = vand.u32 %v1432, 4294901760
          %1434 = vmatpush1.msra.mxu0 %v1433
          %1435 = vmatprep.subr.mxu0 0.0
          %v1436 = vand.u32 %v1267, 4294901760
          %v1437 = vsub.f32 %v1267, %v1436
          %v1438 = vand.u32 %v1437, 4294901760
          %v1439 = vsub.f32 %v1437, %v1438
          %v1440 = vand.u32 %v1439, 4294901760
          %1441 = vmatpush1.msra.mxu0 %v1440
          %1442 = vmatprep.subr.mxu0 0.0
          %v1443 = vand.u32 %v1268, 4294901760
          %v1444 = vsub.f32 %v1268, %v1443
          %v1445 = vand.u32 %v1444, 4294901760
          %v1446 = vsub.f32 %v1444, %v1445
          %v1447 = vand.u32 %v1446, 4294901760
          %1448 = vmatpush1.msra.mxu0 %v1447
          %1449 = vmatprep.subr.mxu0 0.0
          %v1450 = vand.u32 %v1269, 4294901760
          %v1451 = vsub.f32 %v1269, %v1450
          %v1452 = vand.u32 %v1451, 4294901760
          %v1453 = vsub.f32 %v1451, %v1452
          %v1454 = vand.u32 %v1453, 4294901760
          %1455 = vmatpush1.msra.mxu0 %v1454
          %1456 = vmatprep.subr.mxu0 0.0
          %v1457 = vand.u32 %v1270, 4294901760
          %v1458 = vsub.f32 %v1270, %v1457
          %v1459 = vand.u32 %v1458, 4294901760
          %v1460 = vsub.f32 %v1458, %v1459
          %v1461 = vand.u32 %v1460, 4294901760
          %1462 = vmatpush1.msra.mxu0 %v1461
          %1463 = vmatprep.subr.mxu0 0.0
          %v1464 = vand.u32 %v1271, 4294901760
          %v1465 = vsub.f32 %v1271, %v1464
          %v1466 = vand.u32 %v1465, 4294901760
          %v1467 = vsub.f32 %v1465, %v1466
          %v1468 = vand.u32 %v1467, 4294901760
          %1469 = vmatpush1.msra.mxu0 %v1468
          %1470 = vmatprep.subr.mxu0 0.0
          %v1471 = vand.u32 %v1272, 4294901760
          %v1472 = vsub.f32 %v1272, %v1471
          %v1473 = vand.u32 %v1472, 4294901760
          %v1474 = vsub.f32 %v1472, %v1473
          %v1475 = vand.u32 %v1474, 4294901760
          %1476 = vmatpush1.msra.mxu0 %v1475
          %1477 = vmatprep.subr.mxu0 0.0
          %v1478 = vand.u32 %v1273, 4294901760
          %v1479 = vsub.f32 %v1273, %v1478
          %v1480 = vand.u32 %v1479, 4294901760
          %v1481 = vsub.f32 %v1479, %v1480
          %v1482 = vand.u32 %v1481, 4294901760
          %1483 = vmatpush1.msra.mxu0 %v1482
          %1484 = vmatprep.subr.mxu0 0.0
          %v1485 = vand.u32 %v1274, 4294901760
          %v1486 = vsub.f32 %v1274, %v1485
          %v1487 = vand.u32 %v1486, 4294901760
          %v1488 = vsub.f32 %v1486, %v1487
          %v1489 = vand.u32 %v1488, 4294901760
          %1490 = vmatpush1.msra.mxu0 %v1489
          %1491 = vmatprep.subr.mxu0 0.0
          %v1492 = vand.u32 %v1275, 4294901760
          %v1493 = vsub.f32 %v1275, %v1492
          %v1494 = vand.u32 %v1493, 4294901760
          %v1495 = vsub.f32 %v1493, %v1494
          %v1496 = vand.u32 %v1495, 4294901760
          %1497 = vmatpush1.msra.mxu0 %v1496
          %1498 = vmatprep.subr.mxu0 0.0
          %v1499 = vand.u32 %v1276, 4294901760
          %v1500 = vsub.f32 %v1276, %v1499
          %v1501 = vand.u32 %v1500, 4294901760
          %v1502 = vsub.f32 %v1500, %v1501
          %v1503 = vand.u32 %v1502, 4294901760
          %1504 = vmatpush1.msra.mxu0 %v1503
          %1505 = vmatprep.subr.mxu0 0.0
          %v1506 = vand.u32 %v1277, 4294901760
          %v1507 = vsub.f32 %v1277, %v1506
          %v1508 = vand.u32 %v1507, 4294901760
          %v1509 = vsub.f32 %v1507, %v1508
          %v1510 = vand.u32 %v1509, 4294901760
          %1511 = vmatpush1.msra.mxu0 %v1510
          %1512 = vmatprep.subr.mxu0 0.0
          %v1513 = vand.u32 %v1278, 4294901760
          %v1514 = vsub.f32 %v1278, %v1513
          %v1515 = vand.u32 %v1514, 4294901760
          %v1516 = vsub.f32 %v1514, %v1515
          %v1517 = vand.u32 %v1516, 4294901760
          %1518 = vmatpush1.msra.mxu0 %v1517
          %1519 = vmatprep.subr.mxu0 0.0
          %v1520 = vand.u32 %v1279, 4294901760
          %v1521 = vsub.f32 %v1279, %v1520
          %v1522 = vand.u32 %v1521, 4294901760
          %v1523 = vsub.f32 %v1521, %v1522
          %v1524 = vand.u32 %v1523, 4294901760
          %1525 = vmatpush1.msra.mxu0 %v1524
          %1526 = vmatprep.subr.mxu0 0.0
          %v1527 = vand.u32 %v1280, 4294901760
          %v1528 = vsub.f32 %v1280, %v1527
          %v1529 = vand.u32 %v1528, 4294901760
          %v1530 = vsub.f32 %v1528, %v1529
          %v1531 = vand.u32 %v1530, 4294901760
          %1532 = vmatpush1.msra.mxu0 %v1531
          %1533 = vmatprep.subr.mxu0 0.0
          %v1534 = vand.u32 %v1281, 4294901760
          %v1535 = vsub.f32 %v1281, %v1534
          %v1536 = vand.u32 %v1535, 4294901760
          %v1537 = vsub.f32 %v1535, %v1536
          %v1538 = vand.u32 %v1537, 4294901760
          %1539 = vmatpush1.msra.mxu0 %v1538
          %1540 = vmatprep.subr.mxu0 0.0
          %v1541 = vand.u32 %v1282, 4294901760
          %v1542 = vsub.f32 %v1282, %v1541
          %v1543 = vand.u32 %v1542, 4294901760
          %v1544 = vsub.f32 %v1542, %v1543
          %v1545 = vand.u32 %v1544, 4294901760
          %1546 = vmatpush1.msra.mxu0 %v1545
          %1547 = vmatprep.subr.mxu0 0.0
          %v1548 = vand.u32 %v1283, 4294901760
          %v1549 = vsub.f32 %v1283, %v1548
          %v1550 = vand.u32 %v1549, 4294901760
          %v1551 = vsub.f32 %v1549, %v1550
          %v1552 = vand.u32 %v1551, 4294901760
          %1553 = vmatpush1.msra.mxu0 %v1552
          %1554 = vmatprep.subr.mxu0 0.0
          %v1555 = vand.u32 %v1284, 4294901760
          %v1556 = vsub.f32 %v1284, %v1555
          %v1557 = vand.u32 %v1556, 4294901760
          %v1558 = vsub.f32 %v1556, %v1557
          %v1559 = vand.u32 %v1558, 4294901760
          %1560 = vmatpush1.msra.mxu0 %v1559
          %1561 = vmatprep.subr.mxu0 0.0
          %v1562 = vand.u32 %v1285, 4294901760
          %v1563 = vsub.f32 %v1285, %v1562
          %v1564 = vand.u32 %v1563, 4294901760
          %v1565 = vsub.f32 %v1563, %v1564
          %v1566 = vand.u32 %v1565, 4294901760
          %1567 = vmatpush1.msra.mxu0 %v1566
          %1568 = vmatprep.subr.mxu0 0.0
          %v1569 = vand.u32 %v1286, 4294901760
          %v1570 = vsub.f32 %v1286, %v1569
          %v1571 = vand.u32 %v1570, 4294901760
          %v1572 = vsub.f32 %v1570, %v1571
          %v1573 = vand.u32 %v1572, 4294901760
          %1574 = vmatpush1.msra.mxu0 %v1573
          %1575 = vmatprep.subr.mxu0 0.0
          %v1576 = vand.u32 %v1287, 4294901760
          %v1577 = vsub.f32 %v1287, %v1576
          %v1578 = vand.u32 %v1577, 4294901760
          %v1579 = vsub.f32 %v1577, %v1578
          %v1580 = vand.u32 %v1579, 4294901760
          %1581 = vmatpush1.msra.mxu0 %v1580
          %1582 = vmatprep.subr.mxu0 0.0
          %v1583 = vand.u32 %v1288, 4294901760
          %v1584 = vsub.f32 %v1288, %v1583
          %v1585 = vand.u32 %v1584, 4294901760
          %v1586 = vsub.f32 %v1584, %v1585
          %v1587 = vand.u32 %v1586, 4294901760
          %1588 = vmatpush1.msra.mxu0 %v1587
          %1589 = vmatprep.subr.mxu0 0.0
          %v1590 = vand.u32 %v1289, 4294901760
          %v1591 = vsub.f32 %v1289, %v1590
          %v1592 = vand.u32 %v1591, 4294901760
          %v1593 = vsub.f32 %v1591, %v1592
          %v1594 = vand.u32 %v1593, 4294901760
          %1595 = vmatpush1.msra.mxu0 %v1594
          %1596 = vmatprep.subr.mxu0 0.0
          %v1597 = vand.u32 %v1290, 4294901760
          %v1598 = vsub.f32 %v1290, %v1597
          %v1599 = vand.u32 %v1598, 4294901760
          %v1600 = vsub.f32 %v1598, %v1599
          %v1601 = vand.u32 %v1600, 4294901760
          %1602 = vmatpush1.msra.mxu0 %v1601
          %1603 = vmatprep.subr.mxu0 0.0
          %v1604 = vand.u32 %v1291, 4294901760
          %v1605 = vsub.f32 %v1291, %v1604
          %v1606 = vand.u32 %v1605, 4294901760
          %v1607 = vsub.f32 %v1605, %v1606
          %v1608 = vand.u32 %v1607, 4294901760
          %1609 = vmatpush1.msra.mxu0 %v1608
          %1610 = vmatprep.subr.mxu0 0.0
          %v1611 = vand.u32 %v1292, 4294901760
          %v1612 = vsub.f32 %v1292, %v1611
          %v1613 = vand.u32 %v1612, 4294901760
          %v1614 = vsub.f32 %v1612, %v1613
          %v1615 = vand.u32 %v1614, 4294901760
          %1616 = vmatpush1.msra.mxu0 %v1615
          %1617 = vmatprep.subr.mxu0 0.0
          %v1618 = vand.u32 %v1293, 4294901760
          %v1619 = vsub.f32 %v1293, %v1618
          %v1620 = vand.u32 %v1619, 4294901760
          %v1621 = vsub.f32 %v1619, %v1620
          %v1622 = vand.u32 %v1621, 4294901760
          %1623 = vmatpush1.msra.mxu0 %v1622
          %1624 = vmatprep.subr.mxu0 0.0
          %v1625 = vand.u32 %v1294, 4294901760
          %v1626 = vsub.f32 %v1294, %v1625
          %v1627 = vand.u32 %v1626, 4294901760
          %v1628 = vsub.f32 %v1626, %v1627
          %v1629 = vand.u32 %v1628, 4294901760
          %1630 = vmatpush1.msra.mxu0 %v1629
          %1631 = vmatprep.subr.mxu0 0.0
          %v1632 = vand.u32 %v1295, 4294901760
          %v1633 = vsub.f32 %v1295, %v1632
          %v1634 = vand.u32 %v1633, 4294901760
          %v1635 = vsub.f32 %v1633, %v1634
          %v1636 = vand.u32 %v1635, 4294901760
          %1637 = vmatpush1.msra.mxu0 %v1636
          %1638 = vmatprep.subr.mxu0 0.0
          %v1639 = vand.u32 %v1296, 4294901760
          %v1640 = vsub.f32 %v1296, %v1639
          %v1641 = vand.u32 %v1640, 4294901760
          %v1642 = vsub.f32 %v1640, %v1641
          %v1643 = vand.u32 %v1642, 4294901760
          %1644 = vmatpush1.msra.mxu0 %v1643
          %v1645 = vand.u32 %v1306, 4294901760
          %1646 = vmatprep.mubr.f32.mxu0 %v1645
          %v1647 = vand.u32 %v1305, 4294901760
          %1648 = vmatmul.mubr.f32.gmra.mrb[0].mxu0 %v1647
          %v1649 = vpop.f32.mrb[0].mxu0
          %v1650 = vadd.f32 %v1418, %v1649
          %v1651 = vpop.f32.mrb[0].mxu0
          %1652 = vdwg.mxu0
          %1653 = vmatprep.subr.mxu0 0.0
          %v1654 = vand.u32 %v1265, 4294901760
          %v1655 = vsub.f32 %v1265, %v1654
          %1656 = vmatpush1.msra.mxu0 %v1655
          %1657 = vmatprep.subr.mxu0 0.0
          %v1658 = vand.u32 %v1266, 4294901760
          %v1659 = vsub.f32 %v1266, %v1658
          %1660 = vmatpush1.msra.mxu0 %v1659
          %1661 = vmatprep.subr.mxu0 0.0
          %v1662 = vand.u32 %v1267, 4294901760
          %v1663 = vsub.f32 %v1267, %v1662
          %1664 = vmatpush1.msra.mxu0 %v1663
          %1665 = vmatprep.subr.mxu0 0.0
          %v1666 = vand.u32 %v1268, 4294901760
          %v1667 = vsub.f32 %v1268, %v1666
          %1668 = vmatpush1.msra.mxu0 %v1667
          %1669 = vmatprep.subr.mxu0 0.0
          %v1670 = vand.u32 %v1269, 4294901760
          %v1671 = vsub.f32 %v1269, %v1670
          %1672 = vmatpush1.msra.mxu0 %v1671
          %1673 = vmatprep.subr.mxu0 0.0
          %v1674 = vand.u32 %v1270, 4294901760
          %v1675 = vsub.f32 %v1270, %v1674
          %1676 = vmatpush1.msra.mxu0 %v1675
          %1677 = vmatprep.subr.mxu0 0.0
          %v1678 = vand.u32 %v1271, 4294901760
          %v1679 = vsub.f32 %v1271, %v1678
          %1680 = vmatpush1.msra.mxu0 %v1679
          %1681 = vmatprep.subr.mxu0 0.0
          %v1682 = vand.u32 %v1272, 4294901760
          %v1683 = vsub.f32 %v1272, %v1682
          %1684 = vmatpush1.msra.mxu0 %v1683
          %1685 = vmatprep.subr.mxu0 0.0
          %v1686 = vand.u32 %v1273, 4294901760
          %v1687 = vsub.f32 %v1273, %v1686
          %1688 = vmatpush1.msra.mxu0 %v1687
          %1689 = vmatprep.subr.mxu0 0.0
          %v1690 = vand.u32 %v1274, 4294901760
          %v1691 = vsub.f32 %v1274, %v1690
          %1692 = vmatpush1.msra.mxu0 %v1691
          %1693 = vmatprep.subr.mxu0 0.0
          %v1694 = vand.u32 %v1275, 4294901760
          %v1695 = vsub.f32 %v1275, %v1694
          %1696 = vmatpush1.msra.mxu0 %v1695
          %1697 = vmatprep.subr.mxu0 0.0
          %v1698 = vand.u32 %v1276, 4294901760
          %v1699 = vsub.f32 %v1276, %v1698
          %1700 = vmatpush1.msra.mxu0 %v1699
          %1701 = vmatprep.subr.mxu0 0.0
          %v1702 = vand.u32 %v1277, 4294901760
          %v1703 = vsub.f32 %v1277, %v1702
          %1704 = vmatpush1.msra.mxu0 %v1703
          %1705 = vmatprep.subr.mxu0 0.0
          %v1706 = vand.u32 %v1278, 4294901760
          %v1707 = vsub.f32 %v1278, %v1706
          %1708 = vmatpush1.msra.mxu0 %v1707
          %1709 = vmatprep.subr.mxu0 0.0
          %v1710 = vand.u32 %v1279, 4294901760
          %v1711 = vsub.f32 %v1279, %v1710
          %1712 = vmatpush1.msra.mxu0 %v1711
          %1713 = vmatprep.subr.mxu0 0.0
          %v1714 = vand.u32 %v1280, 4294901760
          %v1715 = vsub.f32 %v1280, %v1714
          %1716 = vmatpush1.msra.mxu0 %v1715
          %1717 = vmatprep.subr.mxu0 0.0
          %v1718 = vand.u32 %v1281, 4294901760
          %v1719 = vsub.f32 %v1281, %v1718
          %1720 = vmatpush1.msra.mxu0 %v1719
          %1721 = vmatprep.subr.mxu0 0.0
          %v1722 = vand.u32 %v1282, 4294901760
          %v1723 = vsub.f32 %v1282, %v1722
          %1724 = vmatpush1.msra.mxu0 %v1723
          %1725 = vmatprep.subr.mxu0 0.0
          %v1726 = vand.u32 %v1283, 4294901760
          %v1727 = vsub.f32 %v1283, %v1726
          %1728 = vmatpush1.msra.mxu0 %v1727
          %1729 = vmatprep.subr.mxu0 0.0
          %v1730 = vand.u32 %v1284, 4294901760
          %v1731 = vsub.f32 %v1284, %v1730
          %1732 = vmatpush1.msra.mxu0 %v1731
          %1733 = vmatprep.subr.mxu0 0.0
          %v1734 = vand.u32 %v1285, 4294901760
          %v1735 = vsub.f32 %v1285, %v1734
          %1736 = vmatpush1.msra.mxu0 %v1735
          %1737 = vmatprep.subr.mxu0 0.0
          %v1738 = vand.u32 %v1286, 4294901760
          %v1739 = vsub.f32 %v1286, %v1738
          %1740 = vmatpush1.msra.mxu0 %v1739
          %1741 = vmatprep.subr.mxu0 0.0
          %v1742 = vand.u32 %v1287, 4294901760
          %v1743 = vsub.f32 %v1287, %v1742
          %1744 = vmatpush1.msra.mxu0 %v1743
          %1745 = vmatprep.subr.mxu0 0.0
          %v1746 = vand.u32 %v1288, 4294901760
          %v1747 = vsub.f32 %v1288, %v1746
          %1748 = vmatpush1.msra.mxu0 %v1747
          %1749 = vmatprep.subr.mxu0 0.0
          %v1750 = vand.u32 %v1289, 4294901760
          %v1751 = vsub.f32 %v1289, %v1750
          %1752 = vmatpush1.msra.mxu0 %v1751
          %1753 = vmatprep.subr.mxu0 0.0
          %v1754 = vand.u32 %v1290, 4294901760
          %v1755 = vsub.f32 %v1290, %v1754
          %1756 = vmatpush1.msra.mxu0 %v1755
          %1757 = vmatprep.subr.mxu0 0.0
          %v1758 = vand.u32 %v1291, 4294901760
          %v1759 = vsub.f32 %v1291, %v1758
          %1760 = vmatpush1.msra.mxu0 %v1759
          %1761 = vmatprep.subr.mxu0 0.0
          %v1762 = vand.u32 %v1292, 4294901760
          %v1763 = vsub.f32 %v1292, %v1762
          %1764 = vmatpush1.msra.mxu0 %v1763
          %1765 = vmatprep.subr.mxu0 0.0
          %v1766 = vand.u32 %v1293, 4294901760
          %v1767 = vsub.f32 %v1293, %v1766
          %1768 = vmatpush1.msra.mxu0 %v1767
          %1769 = vmatprep.subr.mxu0 0.0
          %v1770 = vand.u32 %v1294, 4294901760
          %v1771 = vsub.f32 %v1294, %v1770
          %1772 = vmatpush1.msra.mxu0 %v1771
          %1773 = vmatprep.subr.mxu0 0.0
          %v1774 = vand.u32 %v1295, 4294901760
          %v1775 = vsub.f32 %v1295, %v1774
          %1776 = vmatpush1.msra.mxu0 %v1775
          %1777 = vmatprep.subr.mxu0 0.0
          %v1778 = vand.u32 %v1296, 4294901760
          %v1779 = vsub.f32 %v1296, %v1778
          %1780 = vmatpush1.msra.mxu0 %v1779
          %v1781 = vand.u32 %v1306, 4294901760
          %v1782 = vsub.f32 %v1306, %v1781
          %1783 = vmatprep.mubr.f32.mxu0 %v1782
          %v1784 = vand.u32 %v1305, 4294901760
          %v1785 = vsub.f32 %v1305, %v1784
          %1786 = vmatmul.mubr.f32.gmra.mrb[0].mxu0 %v1785
          %v1787 = vpop.f32.mrb[0].mxu0
          %v1788 = vadd.f32 %v1650, %v1787
          %v1789 = vpop.f32.mrb[0].mxu0
          %1790 = vdwg.mxu0
          %1791 = vmatprep.subr.mxu0 0.0
          %v1792 = vand.u32 %v1265, 4294901760
          %1793 = vmatpush1.msra.mxu0 %v1792
          %1794 = vmatprep.subr.mxu0 0.0
          %v1795 = vand.u32 %v1266, 4294901760
          %1796 = vmatpush1.msra.mxu0 %v1795
          %1797 = vmatprep.subr.mxu0 0.0
          %v1798 = vand.u32 %v1267, 4294901760
          %1799 = vmatpush1.msra.mxu0 %v1798
          %1800 = vmatprep.subr.mxu0 0.0
          %v1801 = vand.u32 %v1268, 4294901760
          %1802 = vmatpush1.msra.mxu0 %v1801
          %1803 = vmatprep.subr.mxu0 0.0
          %v1804 = vand.u32 %v1269, 4294901760
          %1805 = vmatpush1.msra.mxu0 %v1804
          %1806 = vmatprep.subr.mxu0 0.0
          %v1807 = vand.u32 %v1270, 4294901760
          %1808 = vmatpush1.msra.mxu0 %v1807
          %1809 = vmatprep.subr.mxu0 0.0
          %v1810 = vand.u32 %v1271, 4294901760
          %1811 = vmatpush1.msra.mxu0 %v1810
          %1812 = vmatprep.subr.mxu0 0.0
          %v1813 = vand.u32 %v1272, 4294901760
          %1814 = vmatpush1.msra.mxu0 %v1813
          %1815 = vmatprep.subr.mxu0 0.0
          %v1816 = vand.u32 %v1273, 4294901760
          %1817 = vmatpush1.msra.mxu0 %v1816
          %1818 = vmatprep.subr.mxu0 0.0
          %v1819 = vand.u32 %v1274, 4294901760
          %1820 = vmatpush1.msra.mxu0 %v1819
          %1821 = vmatprep.subr.mxu0 0.0
          %v1822 = vand.u32 %v1275, 4294901760
          %1823 = vmatpush1.msra.mxu0 %v1822
          %1824 = vmatprep.subr.mxu0 0.0
          %v1825 = vand.u32 %v1276, 4294901760
          %1826 = vmatpush1.msra.mxu0 %v1825
          %1827 = vmatprep.subr.mxu0 0.0
          %v1828 = vand.u32 %v1277, 4294901760
          %1829 = vmatpush1.msra.mxu0 %v1828
          %1830 = vmatprep.subr.mxu0 0.0
          %v1831 = vand.u32 %v1278, 4294901760
          %1832 = vmatpush1.msra.mxu0 %v1831
          %1833 = vmatprep.subr.mxu0 0.0
          %v1834 = vand.u32 %v1279, 4294901760
          %1835 = vmatpush1.msra.mxu0 %v1834
          %1836 = vmatprep.subr.mxu0 0.0
          %v1837 = vand.u32 %v1280, 4294901760
          %1838 = vmatpush1.msra.mxu0 %v1837
          %1839 = vmatprep.subr.mxu0 0.0
          %v1840 = vand.u32 %v1281, 4294901760
          %1841 = vmatpush1.msra.mxu0 %v1840
          %1842 = vmatprep.subr.mxu0 0.0
          %v1843 = vand.u32 %v1282, 4294901760
          %1844 = vmatpush1.msra.mxu0 %v1843
          %1845 = vmatprep.subr.mxu0 0.0
          %v1846 = vand.u32 %v1283, 4294901760
          %1847 = vmatpush1.msra.mxu0 %v1846
          %1848 = vmatprep.subr.mxu0 0.0
          %v1849 = vand.u32 %v1284, 4294901760
          %1850 = vmatpush1.msra.mxu0 %v1849
          %1851 = vmatprep.subr.mxu0 0.0
          %v1852 = vand.u32 %v1285, 4294901760
          %1853 = vmatpush1.msra.mxu0 %v1852
          %1854 = vmatprep.subr.mxu0 0.0
          %v1855 = vand.u32 %v1286, 4294901760
          %1856 = vmatpush1.msra.mxu0 %v1855
          %1857 = vmatprep.subr.mxu0 0.0
          %v1858 = vand.u32 %v1287, 4294901760
          %1859 = vmatpush1.msra.mxu0 %v1858
          %1860 = vmatprep.subr.mxu0 0.0
          %v1861 = vand.u32 %v1288, 4294901760
          %1862 = vmatpush1.msra.mxu0 %v1861
          %1863 = vmatprep.subr.mxu0 0.0
          %v1864 = vand.u32 %v1289, 4294901760
          %1865 = vmatpush1.msra.mxu0 %v1864
          %1866 = vmatprep.subr.mxu0 0.0
          %v1867 = vand.u32 %v1290, 4294901760
          %1868 = vmatpush1.msra.mxu0 %v1867
          %1869 = vmatprep.subr.mxu0 0.0
          %v1870 = vand.u32 %v1291, 4294901760
          %1871 = vmatpush1.msra.mxu0 %v1870
          %1872 = vmatprep.subr.mxu0 0.0
          %v1873 = vand.u32 %v1292, 4294901760
          %1874 = vmatpush1.msra.mxu0 %v1873
          %1875 = vmatprep.subr.mxu0 0.0
          %v1876 = vand.u32 %v1293, 4294901760
          %1877 = vmatpush1.msra.mxu0 %v1876
          %1878 = vmatprep.subr.mxu0 0.0
          %v1879 = vand.u32 %v1294, 4294901760
          %1880 = vmatpush1.msra.mxu0 %v1879
          %1881 = vmatprep.subr.mxu0 0.0
          %v1882 = vand.u32 %v1295, 4294901760
          %1883 = vmatpush1.msra.mxu0 %v1882
          %1884 = vmatprep.subr.mxu0 0.0
          %v1885 = vand.u32 %v1296, 4294901760
          %1886 = vmatpush1.msra.mxu0 %v1885
          %v1887 = vand.u32 %v1306, 4294901760
          %v1888 = vsub.f32 %v1306, %v1887
          %v1889 = vand.u32 %v1888, 4294901760
          %1890 = vmatprep.mubr.f32.mxu0 %v1889
          %v1891 = vand.u32 %v1305, 4294901760
          %v1892 = vsub.f32 %v1305, %v1891
          %v1893 = vand.u32 %v1892, 4294901760
          %1894 = vmatmul.mubr.f32.gmra.mrb[0].mxu0 %v1893
          %v1895 = vpop.f32.mrb[0].mxu0
          %v1896 = vadd.f32 %v1788, %v1895
          %v1897 = vpop.f32.mrb[0].mxu0
          %1898 = vdwg.mxu0
          %1899 = vmatprep.subr.mxu0 0.0
          %v1900 = vand.u32 %v1265, 4294901760
          %v1901 = vsub.f32 %v1265, %v1900
          %v1902 = vand.u32 %v1901, 4294901760
          %1903 = vmatpush1.msra.mxu0 %v1902
          %1904 = vmatprep.subr.mxu0 0.0
          %v1905 = vand.u32 %v1266, 4294901760
          %v1906 = vsub.f32 %v1266, %v1905
          %v1907 = vand.u32 %v1906, 4294901760
          %1908 = vmatpush1.msra.mxu0 %v1907
          %1909 = vmatprep.subr.mxu0 0.0
          %v1910 = vand.u32 %v1267, 4294901760
          %v1911 = vsub.f32 %v1267, %v1910
          %v1912 = vand.u32 %v1911, 4294901760
          %1913 = vmatpush1.msra.mxu0 %v1912
          %1914 = vmatprep.subr.mxu0 0.0
          %v1915 = vand.u32 %v1268, 4294901760
          %v1916 = vsub.f32 %v1268, %v1915
          %v1917 = vand.u32 %v1916, 4294901760
          %1918 = vmatpush1.msra.mxu0 %v1917
          %1919 = vmatprep.subr.mxu0 0.0
          %v1920 = vand.u32 %v1269, 4294901760
          %v1921 = vsub.f32 %v1269, %v1920
          %v1922 = vand.u32 %v1921, 4294901760
          %1923 = vmatpush1.msra.mxu0 %v1922
          %1924 = vmatprep.subr.mxu0 0.0
          %v1925 = vand.u32 %v1270, 4294901760
          %v1926 = vsub.f32 %v1270, %v1925
          %v1927 = vand.u32 %v1926, 4294901760
          %1928 = vmatpush1.msra.mxu0 %v1927
          %1929 = vmatprep.subr.mxu0 0.0
          %v1930 = vand.u32 %v1271, 4294901760
          %v1931 = vsub.f32 %v1271, %v1930
          %v1932 = vand.u32 %v1931, 4294901760
          %1933 = vmatpush1.msra.mxu0 %v1932
          %1934 = vmatprep.subr.mxu0 0.0
          %v1935 = vand.u32 %v1272, 4294901760
          %v1936 = vsub.f32 %v1272, %v1935
          %v1937 = vand.u32 %v1936, 4294901760
          %1938 = vmatpush1.msra.mxu0 %v1937
          %1939 = vmatprep.subr.mxu0 0.0
          %v1940 = vand.u32 %v1273, 4294901760
          %v1941 = vsub.f32 %v1273, %v1940
          %v1942 = vand.u32 %v1941, 4294901760
          %1943 = vmatpush1.msra.mxu0 %v1942
          %1944 = vmatprep.subr.mxu0 0.0
          %v1945 = vand.u32 %v1274, 4294901760
          %v1946 = vsub.f32 %v1274, %v1945
          %v1947 = vand.u32 %v1946, 4294901760
          %1948 = vmatpush1.msra.mxu0 %v1947
          %1949 = vmatprep.subr.mxu0 0.0
          %v1950 = vand.u32 %v1275, 4294901760
          %v1951 = vsub.f32 %v1275, %v1950
          %v1952 = vand.u32 %v1951, 4294901760
          %1953 = vmatpush1.msra.mxu0 %v1952
          %1954 = vmatprep.subr.mxu0 0.0
          %v1955 = vand.u32 %v1276, 4294901760
          %v1956 = vsub.f32 %v1276, %v1955
          %v1957 = vand.u32 %v1956, 4294901760
          %1958 = vmatpush1.msra.mxu0 %v1957
          %1959 = vmatprep.subr.mxu0 0.0
          %v1960 = vand.u32 %v1277, 4294901760
          %v1961 = vsub.f32 %v1277, %v1960
          %v1962 = vand.u32 %v1961, 4294901760
          %1963 = vmatpush1.msra.mxu0 %v1962
          %1964 = vmatprep.subr.mxu0 0.0
          %v1965 = vand.u32 %v1278, 4294901760
          %v1966 = vsub.f32 %v1278, %v1965
          %v1967 = vand.u32 %v1966, 4294901760
          %1968 = vmatpush1.msra.mxu0 %v1967
          %1969 = vmatprep.subr.mxu0 0.0
          %v1970 = vand.u32 %v1279, 4294901760
          %v1971 = vsub.f32 %v1279, %v1970
          %v1972 = vand.u32 %v1971, 4294901760
          %1973 = vmatpush1.msra.mxu0 %v1972
          %1974 = vmatprep.subr.mxu0 0.0
          %v1975 = vand.u32 %v1280, 4294901760
          %v1976 = vsub.f32 %v1280, %v1975
          %v1977 = vand.u32 %v1976, 4294901760
          %1978 = vmatpush1.msra.mxu0 %v1977
          %1979 = vmatprep.subr.mxu0 0.0
          %v1980 = vand.u32 %v1281, 4294901760
          %v1981 = vsub.f32 %v1281, %v1980
          %v1982 = vand.u32 %v1981, 4294901760
          %1983 = vmatpush1.msra.mxu0 %v1982
          %1984 = vmatprep.subr.mxu0 0.0
          %v1985 = vand.u32 %v1282, 4294901760
          %v1986 = vsub.f32 %v1282, %v1985
          %v1987 = vand.u32 %v1986, 4294901760
          %1988 = vmatpush1.msra.mxu0 %v1987
          %1989 = vmatprep.subr.mxu0 0.0
          %v1990 = vand.u32 %v1283, 4294901760
          %v1991 = vsub.f32 %v1283, %v1990
          %v1992 = vand.u32 %v1991, 4294901760
          %1993 = vmatpush1.msra.mxu0 %v1992
          %1994 = vmatprep.subr.mxu0 0.0
          %v1995 = vand.u32 %v1284, 4294901760
          %v1996 = vsub.f32 %v1284, %v1995
          %v1997 = vand.u32 %v1996, 4294901760
          %1998 = vmatpush1.msra.mxu0 %v1997
          %1999 = vmatprep.subr.mxu0 0.0
          %v2000 = vand.u32 %v1285, 4294901760
          %v2001 = vsub.f32 %v1285, %v2000
          %v2002 = vand.u32 %v2001, 4294901760
          %2003 = vmatpush1.msra.mxu0 %v2002
          %2004 = vmatprep.subr.mxu0 0.0
          %v2005 = vand.u32 %v1286, 4294901760
          %v2006 = vsub.f32 %v1286, %v2005
          %v2007 = vand.u32 %v2006, 4294901760
          %2008 = vmatpush1.msra.mxu0 %v2007
          %2009 = vmatprep.subr.mxu0 0.0
          %v2010 = vand.u32 %v1287, 4294901760
          %v2011 = vsub.f32 %v1287, %v2010
          %v2012 = vand.u32 %v2011, 4294901760
          %2013 = vmatpush1.msra.mxu0 %v2012
          %2014 = vmatprep.subr.mxu0 0.0
          %v2015 = vand.u32 %v1288, 4294901760
          %v2016 = vsub.f32 %v1288, %v2015
          %v2017 = vand.u32 %v2016, 4294901760
          %2018 = vmatpush1.msra.mxu0 %v2017
          %2019 = vmatprep.subr.mxu0 0.0
          %v2020 = vand.u32 %v1289, 4294901760
          %v2021 = vsub.f32 %v1289, %v2020
          %v2022 = vand.u32 %v2021, 4294901760
          %2023 = vmatpush1.msra.mxu0 %v2022
          %2024 = vmatprep.subr.mxu0 0.0
          %v2025 = vand.u32 %v1290, 4294901760
          %v2026 = vsub.f32 %v1290, %v2025
          %v2027 = vand.u32 %v2026, 4294901760
          %2028 = vmatpush1.msra.mxu0 %v2027
          %2029 = vmatprep.subr.mxu0 0.0
          %v2030 = vand.u32 %v1291, 4294901760
          %v2031 = vsub.f32 %v1291, %v2030
          %v2032 = vand.u32 %v2031, 4294901760
          %2033 = vmatpush1.msra.mxu0 %v2032
          %2034 = vmatprep.subr.mxu0 0.0
          %v2035 = vand.u32 %v1292, 4294901760
          %v2036 = vsub.f32 %v1292, %v2035
          %v2037 = vand.u32 %v2036, 4294901760
          %2038 = vmatpush1.msra.mxu0 %v2037
          %2039 = vmatprep.subr.mxu0 0.0
          %v2040 = vand.u32 %v1293, 4294901760
          %v2041 = vsub.f32 %v1293, %v2040
          %v2042 = vand.u32 %v2041, 4294901760
          %2043 = vmatpush1.msra.mxu0 %v2042
          %2044 = vmatprep.subr.mxu0 0.0
          %v2045 = vand.u32 %v1294, 4294901760
          %v2046 = vsub.f32 %v1294, %v2045
          %v2047 = vand.u32 %v2046, 4294901760
          %2048 = vmatpush1.msra.mxu0 %v2047
          %2049 = vmatprep.subr.mxu0 0.0
          %v2050 = vand.u32 %v1295, 4294901760
          %v2051 = vsub.f32 %v1295, %v2050
          %v2052 = vand.u32 %v2051, 4294901760
          %2053 = vmatpush1.msra.mxu0 %v2052
          %2054 = vmatprep.subr.mxu0 0.0
          %v2055 = vand.u32 %v1296, 4294901760
          %v2056 = vsub.f32 %v1296, %v2055
          %v2057 = vand.u32 %v2056, 4294901760
          %2058 = vmatpush1.msra.mxu0 %v2057
          %v2059 = vand.u32 %v1306, 4294901760
          %2060 = vmatprep.mubr.f32.mxu0 %v2059
          %v2061 = vand.u32 %v1305, 4294901760
          %2062 = vmatmul.mubr.f32.gmra.mrb[0].mxu0 %v2061
          %v2063 = vpop.f32.mrb[0].mxu0
          %v2064 = vadd.f32 %v1896, %v2063
          %v2065 = vpop.f32.mrb[0].mxu0
          %2066 = vdwg.mxu0
          %2067 = vmatprep.subr.mxu0 0.0
          %v2068 = vand.u32 %v1265, 4294901760
          %2069 = vmatpush1.msra.mxu0 %v2068
          %2070 = vmatprep.subr.mxu0 0.0
          %v2071 = vand.u32 %v1266, 4294901760
          %2072 = vmatpush1.msra.mxu0 %v2071
          %2073 = vmatprep.subr.mxu0 0.0
          %v2074 = vand.u32 %v1267, 4294901760
          %2075 = vmatpush1.msra.mxu0 %v2074
          %2076 = vmatprep.subr.mxu0 0.0
          %v2077 = vand.u32 %v1268, 4294901760
          %2078 = vmatpush1.msra.mxu0 %v2077
          %2079 = vmatprep.subr.mxu0 0.0
          %v2080 = vand.u32 %v1269, 4294901760
          %2081 = vmatpush1.msra.mxu0 %v2080
          %2082 = vmatprep.subr.mxu0 0.0
          %v2083 = vand.u32 %v1270, 4294901760
          %2084 = vmatpush1.msra.mxu0 %v2083
          %2085 = vmatprep.subr.mxu0 0.0
          %v2086 = vand.u32 %v1271, 4294901760
          %2087 = vmatpush1.msra.mxu0 %v2086
          %2088 = vmatprep.subr.mxu0 0.0
          %v2089 = vand.u32 %v1272, 4294901760
          %2090 = vmatpush1.msra.mxu0 %v2089
          %2091 = vmatprep.subr.mxu0 0.0
          %v2092 = vand.u32 %v1273, 4294901760
          %2093 = vmatpush1.msra.mxu0 %v2092
          %2094 = vmatprep.subr.mxu0 0.0
          %v2095 = vand.u32 %v1274, 4294901760
          %2096 = vmatpush1.msra.mxu0 %v2095
          %2097 = vmatprep.subr.mxu0 0.0
          %v2098 = vand.u32 %v1275, 4294901760
          %2099 = vmatpush1.msra.mxu0 %v2098
          %2100 = vmatprep.subr.mxu0 0.0
          %v2101 = vand.u32 %v1276, 4294901760
          %2102 = vmatpush1.msra.mxu0 %v2101
          %2103 = vmatprep.subr.mxu0 0.0
          %v2104 = vand.u32 %v1277, 4294901760
          %2105 = vmatpush1.msra.mxu0 %v2104
          %2106 = vmatprep.subr.mxu0 0.0
          %v2107 = vand.u32 %v1278, 4294901760
          %2108 = vmatpush1.msra.mxu0 %v2107
          %2109 = vmatprep.subr.mxu0 0.0
          %v2110 = vand.u32 %v1279, 4294901760
          %2111 = vmatpush1.msra.mxu0 %v2110
          %2112 = vmatprep.subr.mxu0 0.0
          %v2113 = vand.u32 %v1280, 4294901760
          %2114 = vmatpush1.msra.mxu0 %v2113
          %2115 = vmatprep.subr.mxu0 0.0
          %v2116 = vand.u32 %v1281, 4294901760
          %2117 = vmatpush1.msra.mxu0 %v2116
          %2118 = vmatprep.subr.mxu0 0.0
          %v2119 = vand.u32 %v1282, 4294901760
          %2120 = vmatpush1.msra.mxu0 %v2119
          %2121 = vmatprep.subr.mxu0 0.0
          %v2122 = vand.u32 %v1283, 4294901760
          %2123 = vmatpush1.msra.mxu0 %v2122
          %2124 = vmatprep.subr.mxu0 0.0
          %v2125 = vand.u32 %v1284, 4294901760
          %2126 = vmatpush1.msra.mxu0 %v2125
          %2127 = vmatprep.subr.mxu0 0.0
          %v2128 = vand.u32 %v1285, 4294901760
          %2129 = vmatpush1.msra.mxu0 %v2128
          %2130 = vmatprep.subr.mxu0 0.0
          %v2131 = vand.u32 %v1286, 4294901760
          %2132 = vmatpush1.msra.mxu0 %v2131
          %2133 = vmatprep.subr.mxu0 0.0
          %v2134 = vand.u32 %v1287, 4294901760
          %2135 = vmatpush1.msra.mxu0 %v2134
          %2136 = vmatprep.subr.mxu0 0.0
          %v2137 = vand.u32 %v1288, 4294901760
          %2138 = vmatpush1.msra.mxu0 %v2137
          %2139 = vmatprep.subr.mxu0 0.0
          %v2140 = vand.u32 %v1289, 4294901760
          %2141 = vmatpush1.msra.mxu0 %v2140
          %2142 = vmatprep.subr.mxu0 0.0
          %v2143 = vand.u32 %v1290, 4294901760
          %2144 = vmatpush1.msra.mxu0 %v2143
          %2145 = vmatprep.subr.mxu0 0.0
          %v2146 = vand.u32 %v1291, 4294901760
          %2147 = vmatpush1.msra.mxu0 %v2146
          %2148 = vmatprep.subr.mxu0 0.0
          %v2149 = vand.u32 %v1292, 4294901760
          %2150 = vmatpush1.msra.mxu0 %v2149
          %2151 = vmatprep.subr.mxu0 0.0
          %v2152 = vand.u32 %v1293, 4294901760
          %2153 = vmatpush1.msra.mxu0 %v2152
          %2154 = vmatprep.subr.mxu0 0.0
          %v2155 = vand.u32 %v1294, 4294901760
          %2156 = vmatpush1.msra.mxu0 %v2155
          %2157 = vmatprep.subr.mxu0 0.0
          %v2158 = vand.u32 %v1295, 4294901760
          %2159 = vmatpush1.msra.mxu0 %v2158
          %2160 = vmatprep.subr.mxu0 0.0
          %v2161 = vand.u32 %v1296, 4294901760
          %2162 = vmatpush1.msra.mxu0 %v2161
          %v2163 = vand.u32 %v1306, 4294901760
          %2164 = vmatprep.mubr.f32.mxu0 %v2163
          %v2165 = vand.u32 %v1305, 4294901760
          %2166 = vmatmul.mubr.f32.gmra.mrb[0].mxu0 %v2165
          %v2167 = vpop.f32.mrb[0].mxu0
          %v2168 = vadd.f32 %v2064, %v2167
          %v2169 = vpop.f32.mrb[0].mxu0
          %2170 = vdwg.mxu0
          %v2171 = vadd.f32 %v1297, %v2168
          %2172 = vst [vmem:[#allocation2] sm:$0x3] %v2171
        $region48: #{tpu_custom_call.1} parent=27 // pred_fallthru
          _
        // Predicated region
        $region49: #{tpu_custom_call.1} parent=27 // pred_check
          %p2173 = pneg %p240
        $region50: #{tpu_custom_call.1} parent=27 // pred_check_branch
          %2175 = sbr.rel (%p2173) target = $region52
        $region51: #{tpu_custom_call.1} parent=27 // pred_region
          %v2176 = vld [vmem:[#allocation2] sm:$0x3]
          %2177 = vst [vmem:[%s229] sm:$0x3] %v2176
        $region52: #{tpu_custom_call.1} parent=27 // pred_fallthru
          _
        %s2178 = sand.u32 %s102, 1
        %s2179 = scalar_lea.sflag [#allocation5], %s2178
        %s2180 = sand.u32 %s102, 1
        %s2181 = smul.addr %s2180, 2
        %s2182 = scalar_lea.vmem [#allocation8], %s2181
        // Predicated region
        $region53: #{tpu_custom_call.1} parent=27 // pred_check
          %p2183 = pneg %p112
        $region54: #{tpu_custom_call.1} parent=27 // pred_check_branch
          %2185 = sbr.rel (%p2183) target = $region56
        $region55: #{tpu_custom_call.1} parent=27 // pred_region
          %s2187 = ssub.s32 32, 32
          %2188 = vsyncadd %s2179, %s2187
          %s2189 = smul.addr %s26, 32
          %s2190 = scalar_lea.hbm %s2, %s2189
          %s2192 = sshll.u32 %s2182, 4
          %s2193 = int_to_ptr.vmem [resolvable:$true] %s2192
          %2195 = dma.vmem_to_hbm [thread:$0]  %s2193, 32, %s2190, %s2179
        $region56: #{tpu_custom_call.1} parent=27 // pred_fallthru
          _
      $region28: #{tpu_custom_call.1} parent=5 // pred_fallthru
        _
      %p2196 = scmp.le.s32.totalorder 2, %s17
      // Predicated region
      $region57: #{tpu_custom_call.1} parent=5 // pred_check
        %p2197 = pneg %p2196
      $region58: #{tpu_custom_call.1} parent=5 // pred_check_branch
        %2199 = sbr.rel (%p2197) target = $region60
      $region59: #{tpu_custom_call.1} parent=5 // pred_region
        %s2200 = ssub.s32 %s17, 2
        // Predicated region
        $region61: #{tpu_custom_call.1} parent=59 // pred_check
          %p2201 = pneg %p118
        $region62: #{tpu_custom_call.1} parent=59 // pred_check_branch
          %2203 = sbr.rel (%p2201) target = $region64
        $region63: #{tpu_custom_call.1} parent=59 // pred_region
          %s2204 = sand.u32 %s103, 1
          %s2205 = scalar_lea.sflag [#allocation5], %s2204
          %s2206 = sand.u32 %s103, 1
          %s2207 = smul.addr %s2206, 2
          %s2208 = scalar_lea.vmem [#allocation8], %s2207
          %2209 = dma.done %s2205, 32
        $region64: #{tpu_custom_call.1} parent=59 // pred_fallthru
          _
      $region60: #{tpu_custom_call.1} parent=5 // pred_fallthru
        _
    $region6: #{tpu_custom_call.1} parent=1 // loop_footer
      %s21 = sadd.s32 1, %s17
    $region7: #{tpu_custom_call.1} parent=1 // loop_footer_branch
      %16 = sbr.rel target = $region3
    $region8: #{tpu_custom_call.1} parent=1 // loop_exit
      _
    %2210 = vsyncpa [#allocation4], 1
    %s2211 = scalar_lea.sflag [#allocation4], 1
    %2212 = vsyncpa %s2211, 1
    %2213 = vsyncpa [#allocation7], 1
    %s2214 = scalar_lea.sflag [#allocation7], 1
    %2215 = vsyncpa %s2214, 1
    %2216 = vsyncpa [#allocation5], 1
    %s2217 = scalar_lea.sflag [#allocation5], 1
    %2218 = vsyncpa %s2217, 1

</llo_original>
